<compile_context>
chip_gen: v7x
topology: tpu7x:2x2x1
jax: 0.10.0
libtpu: 0.0.40
codegen_flags: <defaults>
</compile_context>

<pallas_src>
import jax
import jax.numpy as jnp
from jax.experimental import pallas as pl
from jax.experimental.pallas import tpu as pltpu


# ----------------------------- Pallas kernel ---------------------------------
def varlayer_kernel(x_ref, cw_ref, cls_ref, eps_ref, a1c1_ref, rows_ref,
                    o_ref, acc_ref):
    """One (j = out-tile, k = in-tile) grid step.

    x_ref    : (B, in_p)  f32   whole padded activation (VMEM resident, constant map)
    cw_ref   : (tk, tn)   bf16  const of the mean LowRankNet
    cls_ref  : (tk, tn)   bf16  const of the log_sigma LowRankNet
    eps_ref  : (tk, tn)   bf16  pre-drawn N(0,1) reparameterization noise
    a1c1_ref : (tk, 2)    f32   column-packed a1 / c1 (in_-sided low-rank vectors)
    rows_ref : (8, tn)    f32   row-packed a2, c2, mean_b, log_sigma_b, eps_b
    o_ref    : (B, tn)    f32   output tile
    acc_ref  : (B, tn)    f32   VMEM accumulator (scratch)
    """
    k = pl.program_id(1)
    tk = cw_ref.shape[0]

    @pl.when(k == 0)
    def _():
        acc_ref[...] = jnp.zeros_like(acc_ref)

    cw = cw_ref[...].astype(jnp.float32)          # bf16 -> f32 upcast
    cls_ = cls_ref[...].astype(jnp.float32)
    eps_w = eps_ref[...].astype(jnp.float32)
    a1c1 = a1c1_ref[...]                          # (tk, 2)
    rows = rows_ref[...]                          # (8, tn)
    a1 = a1c1[:, 0:1]                             # (tk, 1)
    c1 = a1c1[:, 1:2]
    a2 = rows[0:1, :]                             # (1, tn)
    c2 = rows[1:2, :]

    # Reparameterized weight sample for this tile (f32 elementwise math).
    w = (cw + a1 * a2) + jnp.exp(cls_ + c1 * c2) * eps_w

    # Slice the resident activations; feed the MXU bf16 operands, accumulate in f32.
    x_blk = x_ref[:, pl.ds(k * tk, tk)]
    acc_ref[...] += jnp.dot(x_blk.astype(jnp.bfloat16), w.astype(jnp.bfloat16),
                            preferred_element_type=jnp.float32)

    @pl.when(k == pl.num_programs(1) - 1)
    def _():
        # b = mean_b + exp(log_sigma_b) * eps_b   (rows 2,3,4 of the packed slab)
        b = rows[2:3, :] + jnp.exp(rows[3:4, :]) * rows[4:5, :]
        o_ref[...] = jnp.maximum(acc_ref[...] + b, 0.0).astype(o_ref.dtype)


# ------------------------------- wrapper --------------------------------------
def _round_up(x, m):
    return ((x + m - 1) // m) * m


def _pick_tile(dim_p, candidates=(1024, 512, 256, 128)):
    for c in candidates:
        if dim_p >= c and dim_p % c == 0:
            return c
    return dim_p


def prepare_varlayer_constants(const_w, const_log_sigma, *, tk=None, tn=None,
                               const_dtype=jnp.bfloat16):
    """One-time pad + cast of the two (in_, out_) const matrices.

    Hoisted out of the per-step forward: the padded bf16 slabs are reused by every
    forward call (the per-call pad/cast previously cost more HBM bytes than the kernel).
    Note: bf16 const_log_sigma perturbs sigma by ~1%; pass const_dtype=jnp.float32 if
    tighter variance fidelity is required.
    """
    in_, out_ = const_w.shape
    in_p = _round_up(in_, 128)
    out_p = _round_up(out_, 128)
    if tk is None:
        tk = _pick_tile(in_p)
    if tn is None:
        tn = _pick_tile(out_p)
        # Megacore (v7x) balance: prefer >=2 out-tiles so the "parallel" j axis can
        # shard across both TensorCores.
        if out_p // tn < 2 and tn >= 256:
            tn = tn // 2
    in_p = _round_up(in_p, tk)
    out_p = _round_up(out_p, tn)

    cw_p = jnp.zeros((in_p, out_p), const_dtype).at[:in_, :out_].set(
        const_w.astype(const_dtype))
    cls_p = jnp.zeros((in_p, out_p), const_dtype).at[:in_, :out_].set(
        const_log_sigma.astype(const_dtype))
    return dict(cw_p=cw_p, cls_p=cls_p, in_=in_, out_=out_,
                in_p=in_p, out_p=out_p, tk=tk, tn=tn)


def varlayer_lowrank_pallas(x, prep, a1, a2, c1, c2, mean_b, logsig_b,
                            eps_w, eps_b):
    """Fused relu(x @ (mean + exp(log_sigma)*eps_w) + (mean_b + exp(log_sigma_b)*eps_b))."""
    B = x.shape[0]
    in_, out_ = prep["in_"], prep["out_"]
    in_p, out_p = prep["in_p"], prep["out_p"]
    tk, tn = prep["tk"], prep["tn"]
    grid = (out_p // tn, in_p // tk)               # reduction (in_) axis LAST
    f32 = jnp.float32

    # Per-forward small tensors (all O(in_) / O(out_) / O(B*in_)); padded x columns are
    # zero so the padded (noise-filled) weight rows contribute nothing.
    x_p = x.astype(f32)
    if in_p != in_:
        x_p = jnp.zeros((B, in_p), f32).at[:, :in_].set(x_p)
    a1c1 = jnp.zeros((in_p, 2), f32).at[:in_, 0].set(a1).at[:in_, 1].set(c1)
    rows = jnp.zeros((8, out_p), f32)
    rows = rows.at[0, :out_].set(a2).at[1, :out_].set(c2)
    rows = rows.at[2, :out_].set(mean_b).at[3, :out_].set(logsig_b)
    rows = rows.at[4, :out_].set(eps_b)

    cost = pl.CostEstimate(
        flops=2 * B * in_p * out_p + 6 * in_p * out_p,
        transcendentals=in_p * out_p + out_p,
        bytes_accessed=3 * in_p * out_p * 2 + B * (in_p + out_p) * 4)

    out = pl.pallas_call(
        varlayer_kernel,
        out_shape=jax.ShapeDtypeStruct((B, out_p), f32),
        grid_spec=pltpu.PrefetchScalarGridSpec(
            num_scalar_prefetch=0,
            grid=grid,
            in_specs=[
                pl.BlockSpec((B, in_p), lambda j, k: (0, 0)),   # x: VMEM resident
                pl.BlockSpec((tk, tn), lambda j, k: (k, j)),    # const_w (bf16)
                pl.BlockSpec((tk, tn), lambda j, k: (k, j)),    # const_log_sigma (bf16)
                pl.BlockSpec((tk, tn), lambda j, k: (k, j)),    # eps_w (bf16)
                pl.BlockSpec((tk, 2), lambda j, k: (k, 0)),     # packed a1/c1
                pl.BlockSpec((8, tn), lambda j, k: (0, j)),     # packed a2,c2,bias terms
            ],
            out_specs=pl.BlockSpec((B, tn), lambda j, k: (0, j)),
            scratch_shapes=[pltpu.VMEM((B, tn), jnp.float32)],
        ),
        compiler_params=pltpu.CompilerParams(
            dimension_semantics=("parallel", "arbitrary"),
            vmem_limit_bytes=48 * 1024 * 1024,
        ),
        cost_estimate=cost,
    )(x_p, prep["cw_p"], prep["cls_p"], eps_w, a1c1, rows)
    return out[:, :out_]


# --------------------------- parameter init (synthetic) ----------------------
def xavier_uniform(key, shape, gain=1.0):
    fan_out, fan_in = shape[0], shape[-1]
    a = gain * jnp.sqrt(6.0 / (fan_in + fan_out))
    return jax.random.uniform(key, shape, minval=-a, maxval=a, dtype=jnp.float32)


def init_lowrank_net_matrix(key, in_, out_, hidden,
                            init_lamb=1.0, init_lowrank=1e-4, init_const=1.0):
    k = jax.random.split(key, 8)
    return dict(
        w_w=xavier_uniform(k[0], (hidden, 1), init_lamb),
        w_b=jax.random.normal(k[1], (hidden,)) * 0.1,
        a1_w=xavier_uniform(k[2], (in_, hidden), init_lowrank),
        a1_b=jax.random.normal(k[3], (in_,)) * 0.1,
        a2_w=xavier_uniform(k[4], (out_, hidden), init_lowrank),
        a2_b=jax.random.normal(k[5], (out_,)) * 0.1,
        const=xavier_uniform(k[6], (in_, out_), init_const),
    )


def init_lowrank_net_diag(key, out_, hidden, init_lamb=1.0, init_lowrank=1e-4):
    k = jax.random.split(key, 6)
    return dict(
        w_w=xavier_uniform(k[0], (hidden, 1), init_lamb),
        w_b=jax.random.normal(k[1], (hidden,)) * 0.1,
        d_w=xavier_uniform(k[2], (out_, hidden), init_lowrank),
        d_b=jax.random.normal(k[3], (out_,)) * 0.1,
        const=jax.random.normal(k[4], (out_,)),
    )


def init_varlayer(key, in_, out_, hidden, init_log_sigma=-3.0):
    k = jax.random.split(key, 4)
    p = dict(
        mean=init_lowrank_net_matrix(k[0], in_, out_, hidden),
        log_sigma=init_lowrank_net_matrix(k[1], in_, out_, hidden),
        mean_b=init_lowrank_net_diag(k[2], out_, hidden),
        log_sigma_b=init_lowrank_net_diag(k[3], out_, hidden),
    )
    p["log_sigma"]["const"] = jnp.full((in_, out_), init_log_sigma, jnp.float32)
    p["log_sigma_b"]["const"] = jnp.full((out_,), init_log_sigma, jnp.float32)
    return p


# ---------------------------- hyper-net glue (plain JAX) ---------------------
def lowrank_matrix_vecs(p, lam):
    h = jax.nn.relu(p["w_w"][:, 0] * lam + p["w_b"])                # (hidden,)
    a1 = p["a1_w"] @ h + p["a1_b"]                                  # (in_,)
    a2 = p["a2_w"] @ h + p["a2_b"]                                  # (out_,)
    return a1, a2


def lowrank_diag_vec(p, lam):
    h = jax.nn.relu(p["w_w"][:, 0] * lam + p["w_b"])                # (hidden,)
    return p["const"] + p["d_w"] @ h + p["d_b"]                     # (out_,)


def varlayer_lowrank_forward(params, prep, x, lam, rng, *, training=True):
    out_ = prep["out_"]
    a1, a2 = lowrank_matrix_vecs(params["mean"], lam)
    c1, c2 = lowrank_matrix_vecs(params["log_sigma"], lam)
    mean_b = lowrank_diag_vec(params["mean_b"], lam)
    logsig_b = lowrank_diag_vec(params["log_sigma_b"], lam)

    if training:
        k_w, k_b = jax.random.split(rng)
        # Reparameterization noise, drawn outside the kernel (in-kernel pltpu PRNG has
        # no interpret/CPU lowering) and streamed as bf16 — the padded region's noise is
        # inert because the corresponding x columns / output columns are zero / sliced.
        eps_w = jax.random.normal(k_w, (prep["in_p"], prep["out_p"]), jnp.bfloat16)
        eps_b = jax.random.normal(k_b, (out_,), jnp.float32)
    else:
        # eval-mode path of the original module: w = mean(l), b = mean_b(l)
        eps_w = jnp.zeros((prep["in_p"], prep["out_p"]), jnp.bfloat16)
        eps_b = jnp.zeros((out_,), jnp.float32)

    y = varlayer_lowrank_pallas(x, prep, a1, a2, c1, c2, mean_b, logsig_b,
                                eps_w, eps_b)
    return y, (a1, a2, c1, c2, mean_b, logsig_b, eps_w, eps_b)


# ---------------------------------- main -------------------------------------
if __name__ == "__main__":
    B, IN, OUT, HIDDEN = 8, 256, 384, 16
    lam = 0.7
    f32 = jnp.float32

    root = jax.random.PRNGKey(0)
    k_param, k_x, k_noise = jax.random.split(root, 3)

    params = init_varlayer(k_param, IN, OUT, HIDDEN)
    x = jax.random.normal(k_x, (B, IN), f32)

    # One-time constant preparation (hoisted pad + bf16 cast).
    prep = prepare_varlayer_constants(params["mean"]["const"],
                                      params["log_sigma"]["const"])

    # Training-mode forward.
    out, (a1, a2, c1, c2, mean_b, logsig_b, eps_w, eps_b) = varlayer_lowrank_forward(
        params, prep, x, lam, k_noise, training=True)
    out = jax.block_until_ready(out)
    assert out.shape == (B, OUT)

    # Reference built from the SAME bf16 consts / noise / matmul inputs as the kernel.
    cw = params["mean"]["const"].astype(jnp.bfloat16).astype(f32)
    cls_ = params["log_sigma"]["const"].astype(jnp.bfloat16).astype(f32)
    w = (cw + jnp.outer(a1, a2)) + jnp.exp(cls_ + jnp.outer(c1, c2)) * \
        eps_w[:IN, :OUT].astype(f32)
    b = mean_b + jnp.exp(logsig_b) * eps_b
    ref = jax.nn.relu(jnp.dot(x.astype(jnp.bfloat16), w.astype(jnp.bfloat16),
                              preferred_element_type=f32) + b[None, :])
    assert bool(jnp.allclose(out, ref, atol=2e-2, rtol=2e-2)), \
        "mismatch vs reference relu(x @ w + b)"
    assert bool(jnp.all(out >= 0.0)), "ReLU violated"

    # Eval-mode forward (w = mean, b = mean_b).
    out_eval, _ = varlayer_lowrank_forward(params, prep, x, lam, k_noise,
                                           training=False)
    out_eval = jax.block_until_ready(out_eval)
    w_mean = cw + jnp.outer(a1, a2)
    ref_eval = jax.nn.relu(jnp.dot(x.astype(jnp.bfloat16), w_mean.astype(jnp.bfloat16),
                                   preferred_element_type=f32) + mean_b[None, :])
    assert bool(jnp.allclose(out_eval, ref_eval, atol=2e-2, rtol=2e-2)), \
        "eval-mode mismatch"

    # Second, non-aligned shape to exercise the padding path.
    B2, IN2, OUT2 = 4, 100, 80
    p2 = init_varlayer(jax.random.PRNGKey(3), IN2, OUT2, HIDDEN)
    x2 = jax.random.normal(jax.random.PRNGKey(4), (B2, IN2), f32)
    prep2 = prepare_varlayer_constants(p2["mean"]["const"], p2["log_sigma"]["const"])
    out2, aux2 = varlayer_lowrank_forward(p2, prep2, x2, lam, jax.random.PRNGKey(5),
                                          training=True)
    out2 = jax.block_until_ready(out2)
    a1_2, a2_2, c1_2, c2_2, mb2, lsb2, ew2, eb2 = aux2
    cw2 = p2["mean"]["const"].astype(jnp.bfloat16).astype(f32)
    cls2 = p2["log_sigma"]["const"].astype(jnp.bfloat16).astype(f32)
    w2 = (cw2 + jnp.outer(a1_2, a2_2)) + jnp.exp(cls2 + jnp.outer(c1_2, c2_2)) * \
        ew2[:IN2, :OUT2].astype(f32)
    b2 = mb2 + jnp.exp(lsb2) * eb2
    ref2 = jax.nn.relu(jnp.dot(x2.astype(jnp.bfloat16), w2.astype(jnp.bfloat16),
                               preferred_element_type=f32) + b2[None, :])
    assert out2.shape == (B2, OUT2)
    assert bool(jnp.allclose(out2, ref2, atol=2e-2, rtol=2e-2)), "padded-shape mismatch"

    # TODO(synk): KLD() (Gaussian KL reduction for the ELBO) is not kernelized; only forward().
    # TODO(synk): optional local-reparameterization variant (eps at (B,out_) only) would cut
    #             EUP work ~in_-fold but changes the batch-joint sampling semantics, so it is
    #             not enabled here.
    print("KERNEL_OK")
</pallas_src>

<mosaic_0001>
module attributes {stable_mosaic.version = 11 : i64} {
  func.func @varlayer_kernel(%arg0: i32, %arg1: i32, %arg2: memref<8x256xf32, #tpu.memory_space<vmem>>, %arg3: memref<256x128xbf16, #tpu.memory_space<vmem>>, %arg4: memref<256x128xbf16, #tpu.memory_space<vmem>>, %arg5: memref<256x128xbf16, #tpu.memory_space<vmem>>, %arg6: memref<256x2xf32, #tpu.memory_space<vmem>>, %arg7: memref<8x128xf32, #tpu.memory_space<vmem>>, %arg8: memref<8x128xf32, #tpu.memory_space<vmem>>, %arg9: memref<8x128xf32, #tpu.memory_space<vmem>>) attributes {dimension_semantics = [#tpu.dimension_semantics<parallel>, #tpu.dimension_semantics<arbitrary>], iteration_bounds = array<i64: 3, 1>, scalar_prefetch = 0 : i64, scratch_operands = 1 : i64, tpu.core_type = #tpu.core_type<tc>, window_params = [{pipeline_mode = #tpu.pipeline_mode<synchronous>, transform_indices = @transform_0, window_bounds = array<i64: 8, 256>}, {transform_indices = @transform_1, window_bounds = array<i64: 256, 128>}, {transform_indices = @transform_2, window_bounds = array<i64: 256, 128>}, {transform_indices = @transform_3, window_bounds = array<i64: 256, 128>}, {transform_indices = @transform_4, window_bounds = array<i64: 256, 2>}, {transform_indices = @transform_5, window_bounds = array<i64: 8, 128>}, {transform_indices = @transform_6, window_bounds = array<i64: 8, 128>}]} {
    %c0_i32 = arith.constant 0 : i32
    %0 = arith.cmpi eq, %arg1, %c0_i32 : i32
    %1 = arith.extui %0 : i1 to i32
    %c0_i32_0 = arith.constant 0 : i32
    %2 = arith.cmpi ne, %1, %c0_i32_0 : i32
    scf.if %2 {
      %cst_17 = arith.constant 0.000000e+00 : f32
      %38 = vector.broadcast %cst_17 : f32 to vector<8x128xf32>
      %c0_18 = arith.constant 0 : index
      %c0_19 = arith.constant 0 : index
      %39 = vector.load %arg9[%c0_18, %c0_19] : memref<8x128xf32, #tpu.memory_space<vmem>>, vector<8x128xf32>
      tpu.vector_store %arg9[%c0_18, %c0_19], %38 {strides = array<i32>} : memref<8x128xf32, #tpu.memory_space<vmem>>, vector<8x128xf32>,
    } else {
    }
    %c0 = arith.constant 0 : index
    %c0_1 = arith.constant 0 : index
    %3 = vector.load %arg3[%c0, %c0_1] : memref<256x128xbf16, #tpu.memory_space<vmem>>, vector<256x128xbf16>
    %4 = arith.extf %3 : vector<256x128xbf16> to vector<256x128xf32>
    %c0_2 = arith.constant 0 : index
    %c0_3 = arith.constant 0 : index
    %5 = vector.load %arg4[%c0_2, %c0_3] : memref<256x128xbf16, #tpu.memory_space<vmem>>, vector<256x128xbf16>
    %6 = arith.extf %5 : vector<256x128xbf16> to vector<256x128xf32>
    %c0_4 = arith.constant 0 : index
    %c0_5 = arith.constant 0 : index
    %7 = vector.load %arg5[%c0_4, %c0_5] : memref<256x128xbf16, #tpu.memory_space<vmem>>, vector<256x128xbf16>
    %8 = arith.extf %7 : vector<256x128xbf16> to vector<256x128xf32>
    %c0_6 = arith.constant 0 : index
    %c0_7 = arith.constant 0 : index
    %9 = vector.load %arg6[%c0_6, %c0_7] : memref<256x2xf32, #tpu.memory_space<vmem>>, vector<256x2xf32>
    %c0_8 = arith.constant 0 : index
    %c0_9 = arith.constant 0 : index
    %10 = vector.load %arg7[%c0_8, %c0_9] : memref<8x128xf32, #tpu.memory_space<vmem>>, vector<8x128xf32>
    %11 = vector.extract_strided_slice %9 {offsets = [0, 0], sizes = [256, 1], strides = [1, 1]} : vector<256x2xf32> to vector<256x1xf32>
    %12 = vector.extract_strided_slice %9 {offsets = [0, 1], sizes = [256, 1], strides = [1, 1]} : vector<256x2xf32> to vector<256x1xf32>
    %13 = vector.extract_strided_slice %10 {offsets = [0, 0], sizes = [1, 128], strides = [1, 1]} : vector<8x128xf32> to vector<1x128xf32>
    %14 = vector.extract_strided_slice %10 {offsets = [1, 0], sizes = [1, 128], strides = [1, 1]} : vector<8x128xf32> to vector<1x128xf32>
    %15 = vector.broadcast %11 : vector<256x1xf32> to vector<256x128xf32>
    %16 = vector.broadcast %13 : vector<1x128xf32> to vector<256x128xf32>
    %17 = arith.mulf %15, %16 : vector<256x128xf32>
    %18 = arith.addf %4, %17 : vector<256x128xf32>
    %19 = vector.broadcast %12 : vector<256x1xf32> to vector<256x128xf32>
    %20 = vector.broadcast %14 : vector<1x128xf32> to vector<256x128xf32>
    %21 = arith.mulf %19, %20 : vector<256x128xf32>
    %22 = arith.addf %6, %21 : vector<256x128xf32>
    %23 = math.exp %22 : vector<256x128xf32>
    %24 = arith.mulf %23, %8 : vector<256x128xf32>
    %25 = arith.addf %18, %24 : vector<256x128xf32>
    %c256_i32 = arith.constant 256 : i32
    %26 = arith.muli %arg1, %c256_i32 : i32
    %c0_10 = arith.constant 0 : index
    %27 = arith.index_cast %26 : i32 to index
    %28 = vector.load %arg2[%c0_10, %27] : memref<8x256xf32, #tpu.memory_space<vmem>>, vector<8x256xf32>
    %c0_11 = arith.constant 0 : index
    %c0_12 = arith.constant 0 : index
    %29 = vector.load %arg9[%c0_11, %c0_12] : memref<8x128xf32, #tpu.memory_space<vmem>>, vector<8x128xf32>
    %30 = arith.truncf %28 : vector<8x256xf32> to vector<8x256xbf16>
    %31 = arith.truncf %25 : vector<256x128xf32> to vector<256x128xbf16>
    %cst = arith.constant dense<0.000000e+00> : vector<8x128xf32>
    %32 = tpu.matmul %30, %31, %cst {dimension_numbers = #tpu.dot_dimension_numbers<[1], [0], [0], [1], [0, 0, 1, 1], [], []>} : vector<8x256xbf16>, vector<256x128xbf16>, vector<8x128xf32> -> vector<8x128xf32>
    %33 = arith.addf %29, %32 : vector<8x128xf32>
    %c0_13 = arith.constant 0 : index
    %c0_14 = arith.constant 0 : index
    %34 = vector.load %arg9[%c0_13, %c0_14] : memref<8x128xf32, #tpu.memory_space<vmem>>, vector<8x128xf32>
    tpu.vector_store %arg9[%c0_13, %c0_14], %33 {strides = array<i32>} : memref<8x128xf32, #tpu.memory_space<vmem>>, vector<8x128xf32>,
    %c0_i32_15 = arith.constant 0 : i32
    %35 = arith.cmpi eq, %arg1, %c0_i32_15 : i32
    %36 = arith.extui %35 : i1 to i32
    %c0_i32_16 = arith.constant 0 : i32
    %37 = arith.cmpi ne, %36, %c0_i32_16 : i32
    scf.if %37 {
      %38 = vector.extract_strided_slice %10 {offsets = [2, 0], sizes = [1, 128], strides = [1, 1]} : vector<8x128xf32> to vector<1x128xf32>
      %39 = vector.extract_strided_slice %10 {offsets = [3, 0], sizes = [1, 128], strides = [1, 1]} : vector<8x128xf32> to vector<1x128xf32>
      %40 = math.exp %39 : vector<1x128xf32>
      %41 = vector.extract_strided_slice %10 {offsets = [4, 0], sizes = [1, 128], strides = [1, 1]} : vector<8x128xf32> to vector<1x128xf32>
      %42 = arith.mulf %40, %41 : vector<1x128xf32>
      %43 = arith.addf %38, %42 : vector<1x128xf32>
      %c0_17 = arith.constant 0 : index
      %c0_18 = arith.constant 0 : index
      %44 = vector.load %arg9[%c0_17, %c0_18] : memref<8x128xf32, #tpu.memory_space<vmem>>, vector<8x128xf32>
      %45 = vector.broadcast %43 : vector<1x128xf32> to vector<8x128xf32>
      %46 = arith.addf %44, %45 : vector<8x128xf32>
      %cst_19 = arith.constant 0.000000e+00 : f32
      %47 = vector.broadcast %cst_19 : f32 to vector<8x128xf32>
      %48 = arith.maximumf %46, %47 : vector<8x128xf32>
      %c0_20 = arith.constant 0 : index
      %c0_21 = arith.constant 0 : index
      %49 = vector.load %arg8[%c0_20, %c0_21] : memref<8x128xf32, #tpu.memory_space<vmem>>, vector<8x128xf32>
      tpu.vector_store %arg8[%c0_20, %c0_21], %48 {strides = array<i32>} : memref<8x128xf32, #tpu.memory_space<vmem>>, vector<8x128xf32>,
    } else {
    }
    return
  }
  func.func @transform_0(%arg0: i32, %arg1: i32) -> (i32, i32) {
    %c0_i32 = arith.constant 0 : i32
    %c0_i32_0 = arith.constant 0 : i32
    %c0_i32_1 = arith.constant 0 : i32
    return %c0_i32, %c0_i32_0 : i32, i32
  }
  func.func @transform_1(%arg0: i32, %arg1: i32) -> (i32, i32) {
    %c0_i32 = arith.constant 0 : i32
    return %arg1, %arg0 : i32, i32
  }
  func.func @transform_2(%arg0: i32, %arg1: i32) -> (i32, i32) {
    %c0_i32 = arith.constant 0 : i32
    return %arg1, %arg0 : i32, i32
  }
  func.func @transform_3(%arg0: i32, %arg1: i32) -> (i32, i32) {
    %c0_i32 = arith.constant 0 : i32
    return %arg1, %arg0 : i32, i32
  }
  func.func @transform_4(%arg0: i32, %arg1: i32) -> (i32, i32) {
    %c0_i32 = arith.constant 0 : i32
    %c0_i32_0 = arith.constant 0 : i32
    return %arg1, %c0_i32 : i32, i32
  }
  func.func @transform_5(%arg0: i32, %arg1: i32) -> (i32, i32) {
    %c0_i32 = arith.constant 0 : i32
    %c0_i32_0 = arith.constant 0 : i32
    return %c0_i32, %arg0 : i32, i32
  }
  func.func @transform_6(%arg0: i32, %arg1: i32) -> (i32, i32) {
    %c0_i32 = arith.constant 0 : i32
    %c0_i32_0 = arith.constant 0 : i32
    return %c0_i32, %arg0 : i32, i32
  }
}

</mosaic_0001>

<llo_original>
// kernel: tpu_custom_call.1
$region0: #{tpu_custom_call.1}
  #allocation0 [shape = 'u32[]', space=smem, size = 0x4, offset = 0x4, fixed_abs, tag = 'smem constant byte address 0x4 - core index']
  #allocation1 [shape = 'u32[144,128]{1,0:T(1,128)}', space=vmem, size = 0x12000, scoped, tag = 'internal scratch']
  #allocation2 [shape = 'f32[8,128]{1,0:T(8,128)}', space=vmem, size = 0x1000, scoped, tag = 'scratch operand']
  %s0 = inlined_call_operand.vmem [shape: f32[8,256], index: 0, kind: input, shape index: {}]
  %s1 = inlined_call_operand.hbm [shape: bf16[256,384], index: 1, kind: input, shape index: {}]
  %s2 = inlined_call_operand.hbm [shape: bf16[256,384], index: 2, kind: input, shape index: {}]
  %s3 = inlined_call_operand.hbm [shape: bf16[256,384], index: 3, kind: input, shape index: {}]
  %s4 = inlined_call_operand.vmem [shape: f32[256,2], index: 4, kind: input, shape index: {}]
  %s5 = inlined_call_operand.vmem [shape: f32[8,384], index: 5, kind: input, shape index: {}]
  %s6 = inlined_call_operand.hbm [shape: f32[8,384], index: 6, kind: output, shape index: {}]
  %s7 = sld [smem:[#allocation0]]
  $region77: #{tpu_custom_call.1} parent=0
    _
  %s9 = ssub.s32 1, %s7
  %s10 = scalar_select 0, %s9, %s7
  $region1: #{tpu_custom_call.1} parent=0
    #allocation3 [shape = 'u8[131072]{0}', space=vmem, size = 0x20000, scoped, tag = 'input window, operand 1']
    #allocation4 [shape = 's32[2]{0}', space=sflag, size = 0x8, scoped, tag = 'scoped memory for tpu_custom_call.1']
    #allocation5 [shape = 's32[2]{0}', space=sflag, size = 0x8, scoped, tag = 'scoped memory for tpu_custom_call.1']
    #allocation6 [shape = 'u8[131072]{0}', space=vmem, size = 0x20000, scoped, tag = 'input window, operand 2']
    #allocation7 [shape = 's32[2]{0}', space=sflag, size = 0x8, scoped, tag = 'scoped memory for tpu_custom_call.1']
    #allocation8 [shape = 'u8[131072]{0}', space=vmem, size = 0x20000, scoped, tag = 'input window, operand 3']
    #allocation9 [shape = 'u8[8192]{0}', space=vmem, size = 0x2000, scoped, tag = 'output window, operand 0']
    %11 = vsyncpa [#allocation4], 0
    %s12 = scalar_lea.sflag [#allocation4], 1
    %13 = vsyncpa %s12, 0
    %14 = vsyncpa [#allocation7], 0
    %s15 = scalar_lea.sflag [#allocation7], 1
    %16 = vsyncpa %s15, 0
    %17 = vsyncpa [#allocation5], 0
    %s18 = scalar_lea.sflag [#allocation5], 1
    %19 = vsyncpa %s18, 0
    loop: start=0, step=1, limit=5
    $region2: #{tpu_custom_call.1} parent=1 // loop_pre_header
      _
    $region3: #{tpu_custom_call.1} parent=1 // loop_header
      %s21 = sphi 0, %s25
      %p22 = scmp.ge.s32.totalorder %s21, 5
      %s28 = sphi 0, %s40
      %s29 = sphi 0, %s36
      %s30 = sphi 0, %s28
      %s31 = sphi 0, %s29
      %s32 = sphi 0, %s30
      %s33 = sphi 0, %s31
      %s41 = sphi 0, %s41
      %s43 = sphi 0, %s41
      %s44 = sphi 0, %s43
      %s58 = sphi 0, %s44
      %s66 = sphi 0, %s68
      %s69 = sphi 0, %s66
      %s70 = sphi 0, %s69
      %s86 = sphi 0, %s70
      %s94 = sphi 0, %s96
      %s97 = sphi 0, %s94
      %s98 = sphi 0, %s97
      %s114 = sphi 0, %s98
      %s122 = sphi 0, %s124
      %s125 = sphi 0, %s122
      %s126 = sphi 0, %s125
      %s142 = sphi 0, %s126
      %s148 = sphi 0, %s150
      %s151 = sphi 0, %s148
      %s152 = sphi 0, %s151
      %s168 = sphi 0, %s152
      %s174 = sphi 0, %s176
      %s177 = sphi 0, %s174
      %s178 = sphi 0, %s177
      %s194 = sphi 0, %s178
      %s200 = sphi 0, %s202
      %s203 = sphi 0, %s200
      %s204 = sphi 0, %s203
      %s220 = sphi 0, %s204
    $region4: #{tpu_custom_call.1} parent=1 // loop_header_branch
      %24 = sbr.rel (%p22) target = $region8
    $region5: #{tpu_custom_call.1} parent=1 // loop_body
      %s26 = ssub.s32 %s21, 1
      %s27 = ssub.s32 %s21, 2
      %s34 = sadd.s32 1, %s29
      %p35 = scmp.ge.s32.totalorder %s34, 1
      %s36 = scalar_select %p35, 0, %s34
      %s37 = sadd.s32 1, %s28
      %s38 = scalar_select %p35, %s37, %s28
      %p39 = scmp.ge.s32.totalorder %s38, 3
      %s40 = scalar_select %p39, 0, %s38
      %s42 = sadd.s32 %s41, 1
      %p45 = scmp.eq.s32.totalorder %s21, 2
      %p46 = scmp.ne.s32.totalorder %s41, %s43
      %p47 = scmp.eq.s32.totalorder %s21, 0
      %p48 = por %p46, %p47
      %p49 = scmp.ne.s32.totalorder %s41, %s43
      %p50 = scmp.eq.s32.totalorder %s26, 2
      %p51 = por %p49, %p50
      %p52 = scmp.ne.s32.totalorder %s43, %s44
      %p53 = scmp.eq.s32.totalorder %s26, 0
      %p54 = por %p52, %p53
      %p55 = scmp.ne.s32.totalorder %s43, %s44
      %p56 = scmp.eq.s32.totalorder %s27, 2
      %p57 = por %p55, %p56
      %p59 = scmp.ne.s32.totalorder %s44, %s58
      %p60 = scmp.eq.s32.totalorder %s27, 0
      %p61 = por %p59, %p60
      %s62 = ssub.s32 %s29, %s36
      %s63 = ssub.s32 %s28, %s40
      %s64 = sor.u32 %s62, %s63
      %p65 = scmp.eq.s32.totalorder %s64, 0
      %s67 = sadd.s32 %s66, 1
      %s68 = scalar_select %p65, %s66, %s67
      %p71 = pneg %p65
      %p72 = scmp.eq.s32.totalorder %s21, 2
      %p73 = por %p71, %p72
      %p74 = scmp.ne.s32.totalorder %s66, %s69
      %p75 = scmp.eq.s32.totalorder %s21, 0
      %p76 = por %p74, %p75
      %p77 = scmp.ne.s32.totalorder %s66, %s69
      %p78 = scmp.eq.s32.totalorder %s26, 2
      %p79 = por %p77, %p78
      %p80 = scmp.ne.s32.totalorder %s69, %s70
      %p81 = scmp.eq.s32.totalorder %s26, 0
      %p82 = por %p80, %p81
      %p83 = scmp.ne.s32.totalorder %s69, %s70
      %p84 = scmp.eq.s32.totalorder %s27, 2
      %p85 = por %p83, %p84
      %p87 = scmp.ne.s32.totalorder %s70, %s86
      %p88 = scmp.eq.s32.totalorder %s27, 0
      %p89 = por %p87, %p88
      %s90 = ssub.s32 %s29, %s36
      %s91 = ssub.s32 %s28, %s40
      %s92 = sor.u32 %s90, %s91
      %p93 = scmp.eq.s32.totalorder %s92, 0
      %s95 = sadd.s32 %s94, 1
      %s96 = scalar_select %p93, %s94, %s95
      %p99 = pneg %p93
      %p100 = scmp.eq.s32.totalorder %s21, 2
      %p101 = por %p99, %p100
      %p102 = scmp.ne.s32.totalorder %s94, %s97
      %p103 = scmp.eq.s32.totalorder %s21, 0
      %p104 = por %p102, %p103
      %p105 = scmp.ne.s32.totalorder %s94, %s97
      %p106 = scmp.eq.s32.totalorder %s26, 2
      %p107 = por %p105, %p106
      %p108 = scmp.ne.s32.totalorder %s97, %s98
      %p109 = scmp.eq.s32.totalorder %s26, 0
      %p110 = por %p108, %p109
      %p111 = scmp.ne.s32.totalorder %s97, %s98
      %p112 = scmp.eq.s32.totalorder %s27, 2
      %p113 = por %p111, %p112
      %p115 = scmp.ne.s32.totalorder %s98, %s114
      %p116 = scmp.eq.s32.totalorder %s27, 0
      %p117 = por %p115, %p116
      %s118 = ssub.s32 %s29, %s36
      %s119 = ssub.s32 %s28, %s40
      %s120 = sor.u32 %s118, %s119
      %p121 = scmp.eq.s32.totalorder %s120, 0
      %s123 = sadd.s32 %s122, 1
      %s124 = scalar_select %p121, %s122, %s123
      %p127 = pneg %p121
      %p128 = scmp.eq.s32.totalorder %s21, 2
      %p129 = por %p127, %p128
      %p130 = scmp.ne.s32.totalorder %s122, %s125
      %p131 = scmp.eq.s32.totalorder %s21, 0
      %p132 = por %p130, %p131
      %p133 = scmp.ne.s32.totalorder %s122, %s125
      %p134 = scmp.eq.s32.totalorder %s26, 2
      %p135 = por %p133, %p134
      %p136 = scmp.ne.s32.totalorder %s125, %s126
      %p137 = scmp.eq.s32.totalorder %s26, 0
      %p138 = por %p136, %p137
      %p139 = scmp.ne.s32.totalorder %s125, %s126
      %p140 = scmp.eq.s32.totalorder %s27, 2
      %p141 = por %p139, %p140
      %p143 = scmp.ne.s32.totalorder %s126, %s142
      %p144 = scmp.eq.s32.totalorder %s27, 0
      %p145 = por %p143, %p144
      %s146 = ssub.s32 %s29, %s36
      %p147 = scmp.eq.s32.totalorder %s146, 0
      %s149 = sadd.s32 %s148, 1
      %s150 = scalar_select %p147, %s148, %s149
      %p153 = pneg %p147
      %p154 = scmp.eq.s32.totalorder %s21, 2
      %p155 = por %p153, %p154
      %p156 = scmp.ne.s32.totalorder %s148, %s151
      %p157 = scmp.eq.s32.totalorder %s21, 0
      %p158 = por %p156, %p157
      %p159 = scmp.ne.s32.totalorder %s148, %s151
      %p160 = scmp.eq.s32.totalorder %s26, 2
      %p161 = por %p159, %p160
      %p162 = scmp.ne.s32.totalorder %s151, %s152
      %p163 = scmp.eq.s32.totalorder %s26, 0
      %p164 = por %p162, %p163
      %p165 = scmp.ne.s32.totalorder %s151, %s152
      %p166 = scmp.eq.s32.totalorder %s27, 2
      %p167 = por %p165, %p166
      %p169 = scmp.ne.s32.totalorder %s152, %s168
      %p170 = scmp.eq.s32.totalorder %s27, 0
      %p171 = por %p169, %p170
      %s172 = ssub.s32 %s28, %s40
      %p173 = scmp.eq.s32.totalorder %s172, 0
      %s175 = sadd.s32 %s174, 1
      %s176 = scalar_select %p173, %s174, %s175
      %p179 = pneg %p173
      %p180 = scmp.eq.s32.totalorder %s21, 2
      %p181 = por %p179, %p180
      %p182 = scmp.ne.s32.totalorder %s174, %s177
      %p183 = scmp.eq.s32.totalorder %s21, 0
      %p184 = por %p182, %p183
      %p185 = scmp.ne.s32.totalorder %s174, %s177
      %p186 = scmp.eq.s32.totalorder %s26, 2
      %p187 = por %p185, %p186
      %p188 = scmp.ne.s32.totalorder %s177, %s178
      %p189 = scmp.eq.s32.totalorder %s26, 0
      %p190 = por %p188, %p189
      %p191 = scmp.ne.s32.totalorder %s177, %s178
      %p192 = scmp.eq.s32.totalorder %s27, 2
      %p193 = por %p191, %p192
      %p195 = scmp.ne.s32.totalorder %s178, %s194
      %p196 = scmp.eq.s32.totalorder %s27, 0
      %p197 = por %p195, %p196
      %s198 = ssub.s32 %s28, %s40
      %p199 = scmp.eq.s32.totalorder %s198, 0
      %s201 = sadd.s32 %s200, 1
      %s202 = scalar_select %p199, %s200, %s201
      %p205 = pneg %p199
      %p206 = scmp.eq.s32.totalorder %s21, 2
      %p207 = por %p205, %p206
      %p208 = scmp.ne.s32.totalorder %s200, %s203
      %p209 = scmp.eq.s32.totalorder %s21, 0
      %p210 = por %p208, %p209
      %p211 = scmp.ne.s32.totalorder %s200, %s203
      %p212 = scmp.eq.s32.totalorder %s26, 2
      %p213 = por %p211, %p212
      %p214 = scmp.ne.s32.totalorder %s203, %s204
      %p215 = scmp.eq.s32.totalorder %s26, 0
      %p216 = por %p214, %p215
      %p217 = scmp.ne.s32.totalorder %s203, %s204
      %p218 = scmp.eq.s32.totalorder %s27, 2
      %p219 = por %p217, %p218
      %p221 = scmp.ne.s32.totalorder %s204, %s220
      %p222 = scmp.eq.s32.totalorder %s27, 0
      %p223 = por %p221, %p222
      %p224 = scmp.le.s32.totalorder 1, %s21
      %p225 = scmp.lt.s32.totalorder %s21, 4
      %p226 = pnand %p224, %p225
      %p227 = pneg %p226
      // Predicated region
      $region9: #{tpu_custom_call.1} parent=5 // pred_check
        _
      $region10: #{tpu_custom_call.1} parent=5 // pred_check_branch
        %229 = sbr.rel (%p226) target = $region12
      $region11: #{tpu_custom_call.1} parent=5 // pred_region
        %s230 = ssub.s32 %s21, 1
        // Predicated region
        $region13: #{tpu_custom_call.1} parent=11 // pred_check
          %p231 = pneg %p54
        $region14: #{tpu_custom_call.1} parent=11 // pred_check_branch
          %233 = sbr.rel (%p231) target = $region16
        $region15: #{tpu_custom_call.1} parent=11 // pred_region
          _
        $region16: #{tpu_custom_call.1} parent=11 // pred_fallthru
          _
        // Predicated region
        $region17: #{tpu_custom_call.1} parent=11 // pred_check
          %p234 = pneg %p164
        $region18: #{tpu_custom_call.1} parent=11 // pred_check_branch
          %236 = sbr.rel (%p234) target = $region20
        $region19: #{tpu_custom_call.1} parent=11 // pred_region
          %s237 = smul.u32 32, %s31
          %p238 = scmp.lt.s32.totalorder %s237, 31
          %s239 = scalar_select %p238, %s237, 31
          %s240 = smul.addr %s239, 8
          %s241 = scalar_lea.vmem %s4, %s240
          %s242 = smul.u32 32, %s31
        $region20: #{tpu_custom_call.1} parent=11 // pred_fallthru
          _
      $region12: #{tpu_custom_call.1} parent=5 // pred_fallthru
        _
      %p243 = scmp.lt.s32.totalorder %s21, 3
      // Predicated region
      $region21: #{tpu_custom_call.1} parent=5 // pred_check
        %p244 = pneg %p243
      $region22: #{tpu_custom_call.1} parent=5 // pred_check_branch
        %246 = sbr.rel (%p244) target = $region24
      $region23: #{tpu_custom_call.1} parent=5 // pred_region
        // Predicated region
        $region25: #{tpu_custom_call.1} parent=23 // pred_check
          %p247 = pneg %p76
        $region26: #{tpu_custom_call.1} parent=23 // pred_check_branch
          %249 = sbr.rel (%p247) target = $region28
        $region27: #{tpu_custom_call.1} parent=23 // pred_region
          %s250 = sand.u32 %s66, 1
          %s251 = scalar_lea.sflag [#allocation4], %s250
          %s252 = sand.u32 %s66, 1
          %s253 = smul.addr %s252, 128
          %s254 = scalar_lea.vmem [#allocation3], %s253
          %s255 = smul.u32 32, %s29
          %s257 = ssub.s32 2048, 2048
          %258 = vsyncadd %s251, %s257
          %s259 = smul.addr %s255, 3
          %s260 = sadd.s32 %s28, %s259
          %s261 = smul.addr %s260, 64
          %s262 = scalar_lea.hbm %s1, %s261
          %s263 = sshll.u32 %s254, 4
          %s264 = int_to_ptr.vmem [resolvable:$true] %s263
          %269 = dma.hbm_to_vmem [thread:$0]  %s262, 2048, %s264, %s251, 192, 64, 4
        $region28: #{tpu_custom_call.1} parent=23 // pred_fallthru
          _
        // Predicated region
        $region29: #{tpu_custom_call.1} parent=23 // pred_check
          %p270 = pneg %p104
        $region30: #{tpu_custom_call.1} parent=23 // pred_check_branch
          %272 = sbr.rel (%p270) target = $region32
        $region31: #{tpu_custom_call.1} parent=23 // pred_region
          %s273 = sand.u32 %s21, 1
          %s274 = scalar_lea.sflag [#allocation7], %s273
          %s275 = sand.u32 %s94, 1
          %s276 = smul.addr %s275, 128
          %s277 = scalar_lea.vmem [#allocation6], %s276
          %s278 = smul.u32 32, %s29
          %s280 = ssub.s32 2048, 2048
          %281 = vsyncadd %s274, %s280
          %s282 = smul.addr %s278, 3
          %s283 = sadd.s32 %s28, %s282
          %s284 = smul.addr %s283, 64
          %s285 = scalar_lea.hbm %s2, %s284
          %s286 = sshll.u32 %s277, 4
          %s287 = int_to_ptr.vmem [resolvable:$true] %s286
          %292 = dma.hbm_to_vmem [thread:$0]  %s285, 2048, %s287, %s274, 192, 64, 4
        $region32: #{tpu_custom_call.1} parent=23 // pred_fallthru
          _
        // Predicated region
        $region33: #{tpu_custom_call.1} parent=23 // pred_check
          %p293 = pneg %p132
        $region34: #{tpu_custom_call.1} parent=23 // pred_check_branch
          %295 = sbr.rel (%p293) target = $region36
        $region35: #{tpu_custom_call.1} parent=23 // pred_region
          %s296 = sand.u32 %s21, 1
          %s297 = scalar_lea.sflag [#allocation7], %s296
          %s298 = sand.u32 %s122, 1
          %s299 = smul.addr %s298, 128
          %s300 = scalar_lea.vmem [#allocation8], %s299
          %s301 = smul.u32 32, %s29
          %s303 = ssub.s32 2048, 2048
          %304 = vsyncadd %s297, %s303
          %s305 = smul.addr %s301, 3
          %s306 = sadd.s32 %s28, %s305
          %s307 = smul.addr %s306, 64
          %s308 = scalar_lea.hbm %s3, %s307
          %s309 = sshll.u32 %s300, 4
          %s310 = int_to_ptr.vmem [resolvable:$true] %s309
          %315 = dma.hbm_to_vmem [thread:$0]  %s308, 2048, %s310, %s297, 192, 64, 4
        $region36: #{tpu_custom_call.1} parent=23 // pred_fallthru
          _
        // Predicated region
        $region37: #{tpu_custom_call.1} parent=23 // pred_check
          %p316 = pneg %p184
        $region38: #{tpu_custom_call.1} parent=23 // pred_check_branch
          %318 = sbr.rel (%p316) target = $region40
        $region39: #{tpu_custom_call.1} parent=23 // pred_region
          %p319 = scmp.lt.s32.totalorder %s28, 2
          %s320 = scalar_select %p319, %s28, 2
          %s321 = smul.addr %s320, 8
          %s322 = scalar_lea.vmem %s5, %s321
        $region40: #{tpu_custom_call.1} parent=23 // pred_fallthru
          _
      $region24: #{tpu_custom_call.1} parent=5 // pred_fallthru
        _
      %p323 = scmp.le.s32.totalorder 1, %s21
      %p324 = scmp.lt.s32.totalorder %s21, 4
      %p325 = pnand %p323, %p324
      %p326 = pneg %p325
      // Predicated region
      $region41: #{tpu_custom_call.1} parent=5 // pred_check
        _
      $region42: #{tpu_custom_call.1} parent=5 // pred_check_branch
        %328 = sbr.rel (%p325) target = $region44
      $region43: #{tpu_custom_call.1} parent=5 // pred_region
        %s329 = ssub.s32 %s21, 1
        %s330 = sand.u32 %s69, 1
        %s331 = scalar_lea.sflag [#allocation4], %s330
        %s332 = sand.u32 %s69, 1
        %s333 = smul.addr %s332, 128
        %s334 = scalar_lea.vmem [#allocation3], %s333
        // Predicated region
        $region45: #{tpu_custom_call.1} parent=43 // pred_check
          %p335 = pneg %p82
        $region46: #{tpu_custom_call.1} parent=43 // pred_check_branch
          %337 = sbr.rel (%p335) target = $region48
        $region47: #{tpu_custom_call.1} parent=43 // pred_region
          %338 = dma.done %s331, 2048
        $region48: #{tpu_custom_call.1} parent=43 // pred_fallthru
          _
        %s339 = sand.u32 %s26, 1
        %s340 = scalar_lea.sflag [#allocation7], %s339
        %s341 = sand.u32 %s97, 1
        %s342 = smul.addr %s341, 128
        %s343 = scalar_lea.vmem [#allocation6], %s342
        // Predicated region
        $region49: #{tpu_custom_call.1} parent=43 // pred_check
          %p344 = pneg %p110
        $region50: #{tpu_custom_call.1} parent=43 // pred_check_branch
          %346 = sbr.rel (%p344) target = $region52
        $region51: #{tpu_custom_call.1} parent=43 // pred_region
          %347 = dma.done %s340, 2048
        $region52: #{tpu_custom_call.1} parent=43 // pred_fallthru
          _
        %s348 = sand.u32 %s26, 1
        %s349 = scalar_lea.sflag [#allocation7], %s348
        %s350 = sand.u32 %s125, 1
        %s351 = smul.addr %s350, 128
        %s352 = scalar_lea.vmem [#allocation8], %s351
        // Predicated region
        $region53: #{tpu_custom_call.1} parent=43 // pred_check
          %p353 = pneg %p138
        $region54: #{tpu_custom_call.1} parent=43 // pred_check_branch
          %355 = sbr.rel (%p353) target = $region56
        $region55: #{tpu_custom_call.1} parent=43 // pred_region
          %356 = dma.done %s349, 2048
        $region56: #{tpu_custom_call.1} parent=43 // pred_fallthru
          _
        %p357 = pneg %p54
        %p358 = pneg %p51
        %s359 = sand.u32 %s69, 1
        %s360 = scalar_lea.sflag [#allocation4], %s359
        %s361 = sand.u32 %s69, 1
        %s362 = smul.addr %s361, 128
        %s363 = scalar_lea.vmem [#allocation3], %s362
        %p364 = pneg %p82
        %p365 = pneg %p79
        %s366 = sand.u32 %s26, 1
        %s367 = scalar_lea.sflag [#allocation7], %s366
        %s368 = sand.u32 %s97, 1
        %s369 = smul.addr %s368, 128
        %s370 = scalar_lea.vmem [#allocation6], %s369
        %p371 = pneg %p110
        %p372 = pneg %p107
        %s373 = sand.u32 %s26, 1
        %s374 = scalar_lea.sflag [#allocation7], %s373
        %s375 = sand.u32 %s125, 1
        %s376 = smul.addr %s375, 128
        %s377 = scalar_lea.vmem [#allocation8], %s376
        %p378 = pneg %p138
        %p379 = pneg %p135
        %s380 = smul.u32 32, %s31
        %p381 = scmp.lt.s32.totalorder %s380, 31
        %s382 = scalar_select %p381, %s380, 31
        %s383 = smul.addr %s382, 8
        %s384 = scalar_lea.vmem %s4, %s383
        %p385 = pneg %p164
        %p386 = pneg %p161
        %p387 = scmp.lt.s32.totalorder %s30, 2
        %s388 = scalar_select %p387, %s30, 2
        %s389 = smul.addr %s388, 8
        %s390 = scalar_lea.vmem %s5, %s389
        %p391 = pneg %p190
        %p392 = pneg %p187
        %p393 = pneg %p216
        %p394 = pneg %p213
        %s395 = sand.u32 %s203, 1
        %s396 = scalar_lea.sflag [#allocation5], %s395
        %s397 = sand.u32 %s203, 1
        %s398 = smul.addr %s397, 8
        %s399 = scalar_lea.vmem [#allocation9], %s398
        %s400 = smul.u32 32, %s31
        %s401 = smul.u32 32, %s31
        %s402 = smul.u32 32, %s31
        %s403 = smul.u32 32, %s31
        %p404 = scmp.lt.s32.totalorder %s403, 31
        %s405 = scalar_select %p404, %s403, 31
        %s406 = smul.addr %s405, 8
        %s407 = scalar_lea.vmem %s4, %s406
        %s408 = smul.u32 32, %s31
        %p409 = scmp.lt.s32.totalorder %s30, 2
        %s410 = scalar_select %p409, %s30, 2
        %s411 = smul.addr %s410, 8
        %s412 = scalar_lea.vmem %s5, %s411
        %p414 = scmp.eq.s32.totalorder %s31, 0
        // Predicated region
        $region57: #{tpu_custom_call.1} parent=43 // pred_check
          %p415 = pneg %p414
        $region58: #{tpu_custom_call.1} parent=43 // pred_check_branch
          %417 = sbr.rel (%p415) target = $region60
        $region59: #{tpu_custom_call.1} parent=43 // pred_region
          %418 = vst [vmem:[#allocation2] sm:$0xff] 0.0
        $region60: #{tpu_custom_call.1} parent=43 // pred_fallthru
          _
        %v419 = vld [vmem:[%s334] sm:$0xf]
        %v420 = vld [vmem:[%s334 + $0x4] sm:$0xf]
        %v421 = vld [vmem:[%s334 + $0x8] sm:$0xf]
        %v422 = vld [vmem:[%s334 + $0xc] sm:$0xf]
        %v423 = vld [vmem:[%s334 + $0x10] sm:$0xf]
        %v424 = vld [vmem:[%s334 + $0x14] sm:$0xf]
        %v425 = vld [vmem:[%s334 + $0x18] sm:$0xf]
        %v426 = vld [vmem:[%s334 + $0x1c] sm:$0xf]
        %v427 = vld [vmem:[%s334 + $0x20] sm:$0xf]
        %v428 = vld [vmem:[%s334 + $0x24] sm:$0xf]
        %v429 = vld [vmem:[%s334 + $0x28] sm:$0xf]
        %v430 = vld [vmem:[%s334 + $0x2c] sm:$0xf]
        %v431 = vld [vmem:[%s334 + $0x30] sm:$0xf]
        %v432 = vld [vmem:[%s334 + $0x34] sm:$0xf]
        %v433 = vld [vmem:[%s334 + $0x38] sm:$0xf]
        %v434 = vld [vmem:[%s334 + $0x3c] sm:$0xf]
        %v435 = vld [vmem:[%s334 + $0x40] sm:$0xf]
        %v436 = vld [vmem:[%s334 + $0x44] sm:$0xf]
        %v437 = vld [vmem:[%s334 + $0x48] sm:$0xf]
        %v438 = vld [vmem:[%s334 + $0x4c] sm:$0xf]
        %v439 = vld [vmem:[%s334 + $0x50] sm:$0xf]
        %v440 = vld [vmem:[%s334 + $0x54] sm:$0xf]
        %v441 = vld [vmem:[%s334 + $0x58] sm:$0xf]
        %v442 = vld [vmem:[%s334 + $0x5c] sm:$0xf]
        %v443 = vld [vmem:[%s334 + $0x60] sm:$0xf]
        %v444 = vld [vmem:[%s334 + $0x64] sm:$0xf]
        %v445 = vld [vmem:[%s334 + $0x68] sm:$0xf]
        %v446 = vld [vmem:[%s334 + $0x6c] sm:$0xf]
        %v447 = vld [vmem:[%s334 + $0x70] sm:$0xf]
        %v448 = vld [vmem:[%s334 + $0x74] sm:$0xf]
        %v449 = vld [vmem:[%s334 + $0x78] sm:$0xf]
        %v450 = vld [vmem:[%s334 + $0x7c] sm:$0xf]
        %v451 = vunpack.c.l.bf16 %v419
        %v452 = vunpack.c.l.bf16 %v420
        %v453 = vunpack.c.l.bf16 %v421
        %v454 = vunpack.c.l.bf16 %v422
        %v455 = vunpack.c.l.bf16 %v423
        %v456 = vunpack.c.l.bf16 %v424
        %v457 = vunpack.c.l.bf16 %v425
        %v458 = vunpack.c.l.bf16 %v426
        %v459 = vunpack.c.l.bf16 %v427
        %v460 = vunpack.c.l.bf16 %v428
        %v461 = vunpack.c.l.bf16 %v429
        %v462 = vunpack.c.l.bf16 %v430
        %v463 = vunpack.c.l.bf16 %v431
        %v464 = vunpack.c.l.bf16 %v432
        %v465 = vunpack.c.l.bf16 %v433
        %v466 = vunpack.c.l.bf16 %v434
        %v467 = vunpack.c.l.bf16 %v435
        %v468 = vunpack.c.l.bf16 %v436
        %v469 = vunpack.c.l.bf16 %v437
        %v470 = vunpack.c.l.bf16 %v438
        %v471 = vunpack.c.l.bf16 %v439
        %v472 = vunpack.c.l.bf16 %v440
        %v473 = vunpack.c.l.bf16 %v441
        %v474 = vunpack.c.l.bf16 %v442
        %v475 = vunpack.c.l.bf16 %v443
        %v476 = vunpack.c.l.bf16 %v444
        %v477 = vunpack.c.l.bf16 %v445
        %v478 = vunpack.c.l.bf16 %v446
        %v479 = vunpack.c.l.bf16 %v447
        %v480 = vunpack.c.l.bf16 %v448
        %v481 = vunpack.c.l.bf16 %v449
        %v482 = vunpack.c.l.bf16 %v450
        %v483 = vld [vmem:[%s343] sm:$0xf]
        %v484 = vld [vmem:[%s343 + $0x4] sm:$0xf]
        %v485 = vld [vmem:[%s343 + $0x8] sm:$0xf]
        %v486 = vld [vmem:[%s343 + $0xc] sm:$0xf]
        %v487 = vld [vmem:[%s343 + $0x10] sm:$0xf]
        %v488 = vld [vmem:[%s343 + $0x14] sm:$0xf]
        %v489 = vld [vmem:[%s343 + $0x18] sm:$0xf]
        %v490 = vld [vmem:[%s343 + $0x1c] sm:$0xf]
        %v491 = vld [vmem:[%s343 + $0x20] sm:$0xf]
        %v492 = vld [vmem:[%s343 + $0x24] sm:$0xf]
        %v493 = vld [vmem:[%s343 + $0x28] sm:$0xf]
        %v494 = vld [vmem:[%s343 + $0x2c] sm:$0xf]
        %v495 = vld [vmem:[%s343 + $0x30] sm:$0xf]
        %v496 = vld [vmem:[%s343 + $0x34] sm:$0xf]
        %v497 = vld [vmem:[%s343 + $0x38] sm:$0xf]
        %v498 = vld [vmem:[%s343 + $0x3c] sm:$0xf]
        %v499 = vld [vmem:[%s343 + $0x40] sm:$0xf]
        %v500 = vld [vmem:[%s343 + $0x44] sm:$0xf]
        %v501 = vld [vmem:[%s343 + $0x48] sm:$0xf]
        %v502 = vld [vmem:[%s343 + $0x4c] sm:$0xf]
        %v503 = vld [vmem:[%s343 + $0x50] sm:$0xf]
        %v504 = vld [vmem:[%s343 + $0x54] sm:$0xf]
        %v505 = vld [vmem:[%s343 + $0x58] sm:$0xf]
        %v506 = vld [vmem:[%s343 + $0x5c] sm:$0xf]
        %v507 = vld [vmem:[%s343 + $0x60] sm:$0xf]
        %v508 = vld [vmem:[%s343 + $0x64] sm:$0xf]
        %v509 = vld [vmem:[%s343 + $0x68] sm:$0xf]
        %v510 = vld [vmem:[%s343 + $0x6c] sm:$0xf]
        %v511 = vld [vmem:[%s343 + $0x70] sm:$0xf]
        %v512 = vld [vmem:[%s343 + $0x74] sm:$0xf]
        %v513 = vld [vmem:[%s343 + $0x78] sm:$0xf]
        %v514 = vld [vmem:[%s343 + $0x7c] sm:$0xf]
        %v515 = vunpack.c.l.bf16 %v483
        %v516 = vunpack.c.l.bf16 %v484
        %v517 = vunpack.c.l.bf16 %v485
        %v518 = vunpack.c.l.bf16 %v486
        %v519 = vunpack.c.l.bf16 %v487
        %v520 = vunpack.c.l.bf16 %v488
        %v521 = vunpack.c.l.bf16 %v489
        %v522 = vunpack.c.l.bf16 %v490
        %v523 = vunpack.c.l.bf16 %v491
        %v524 = vunpack.c.l.bf16 %v492
        %v525 = vunpack.c.l.bf16 %v493
        %v526 = vunpack.c.l.bf16 %v494
        %v527 = vunpack.c.l.bf16 %v495
        %v528 = vunpack.c.l.bf16 %v496
        %v529 = vunpack.c.l.bf16 %v497
        %v530 = vunpack.c.l.bf16 %v498
        %v531 = vunpack.c.l.bf16 %v499
        %v532 = vunpack.c.l.bf16 %v500
        %v533 = vunpack.c.l.bf16 %v501
        %v534 = vunpack.c.l.bf16 %v502
        %v535 = vunpack.c.l.bf16 %v503
        %v536 = vunpack.c.l.bf16 %v504
        %v537 = vunpack.c.l.bf16 %v505
        %v538 = vunpack.c.l.bf16 %v506
        %v539 = vunpack.c.l.bf16 %v507
        %v540 = vunpack.c.l.bf16 %v508
        %v541 = vunpack.c.l.bf16 %v509
        %v542 = vunpack.c.l.bf16 %v510
        %v543 = vunpack.c.l.bf16 %v511
        %v544 = vunpack.c.l.bf16 %v512
        %v545 = vunpack.c.l.bf16 %v513
        %v546 = vunpack.c.l.bf16 %v514
        %v547 = vld [vmem:[%s352] sm:$0xf]
        %v548 = vld [vmem:[%s352 + $0x4] sm:$0xf]
        %v549 = vld [vmem:[%s352 + $0x8] sm:$0xf]
        %v550 = vld [vmem:[%s352 + $0xc] sm:$0xf]
        %v551 = vld [vmem:[%s352 + $0x10] sm:$0xf]
        %v552 = vld [vmem:[%s352 + $0x14] sm:$0xf]
        %v553 = vld [vmem:[%s352 + $0x18] sm:$0xf]
        %v554 = vld [vmem:[%s352 + $0x1c] sm:$0xf]
        %v555 = vld [vmem:[%s352 + $0x20] sm:$0xf]
        %v556 = vld [vmem:[%s352 + $0x24] sm:$0xf]
        %v557 = vld [vmem:[%s352 + $0x28] sm:$0xf]
        %v558 = vld [vmem:[%s352 + $0x2c] sm:$0xf]
        %v559 = vld [vmem:[%s352 + $0x30] sm:$0xf]
        %v560 = vld [vmem:[%s352 + $0x34] sm:$0xf]
        %v561 = vld [vmem:[%s352 + $0x38] sm:$0xf]
        %v562 = vld [vmem:[%s352 + $0x3c] sm:$0xf]
        %v563 = vld [vmem:[%s352 + $0x40] sm:$0xf]
        %v564 = vld [vmem:[%s352 + $0x44] sm:$0xf]
        %v565 = vld [vmem:[%s352 + $0x48] sm:$0xf]
        %v566 = vld [vmem:[%s352 + $0x4c] sm:$0xf]
        %v567 = vld [vmem:[%s352 + $0x50] sm:$0xf]
        %v568 = vld [vmem:[%s352 + $0x54] sm:$0xf]
        %v569 = vld [vmem:[%s352 + $0x58] sm:$0xf]
        %v570 = vld [vmem:[%s352 + $0x5c] sm:$0xf]
        %v571 = vld [vmem:[%s352 + $0x60] sm:$0xf]
        %v572 = vld [vmem:[%s352 + $0x64] sm:$0xf]
        %v573 = vld [vmem:[%s352 + $0x68] sm:$0xf]
        %v574 = vld [vmem:[%s352 + $0x6c] sm:$0xf]
        %v575 = vld [vmem:[%s352 + $0x70] sm:$0xf]
        %v576 = vld [vmem:[%s352 + $0x74] sm:$0xf]
        %v577 = vld [vmem:[%s352 + $0x78] sm:$0xf]
        %v578 = vld [vmem:[%s352 + $0x7c] sm:$0xf]
        %v579 = vunpack.c.l.bf16 %v547
        %v580 = vunpack.c.l.bf16 %v548
        %v581 = vunpack.c.l.bf16 %v549
        %v582 = vunpack.c.l.bf16 %v550
        %v583 = vunpack.c.l.bf16 %v551
        %v584 = vunpack.c.l.bf16 %v552
        %v585 = vunpack.c.l.bf16 %v553
        %v586 = vunpack.c.l.bf16 %v554
        %v587 = vunpack.c.l.bf16 %v555
        %v588 = vunpack.c.l.bf16 %v556
        %v589 = vunpack.c.l.bf16 %v557
        %v590 = vunpack.c.l.bf16 %v558
        %v591 = vunpack.c.l.bf16 %v559
        %v592 = vunpack.c.l.bf16 %v560
        %v593 = vunpack.c.l.bf16 %v561
        %v594 = vunpack.c.l.bf16 %v562
        %v595 = vunpack.c.l.bf16 %v563
        %v596 = vunpack.c.l.bf16 %v564
        %v597 = vunpack.c.l.bf16 %v565
        %v598 = vunpack.c.l.bf16 %v566
        %v599 = vunpack.c.l.bf16 %v567
        %v600 = vunpack.c.l.bf16 %v568
        %v601 = vunpack.c.l.bf16 %v569
        %v602 = vunpack.c.l.bf16 %v570
        %v603 = vunpack.c.l.bf16 %v571
        %v604 = vunpack.c.l.bf16 %v572
        %v605 = vunpack.c.l.bf16 %v573
        %v606 = vunpack.c.l.bf16 %v574
        %v607 = vunpack.c.l.bf16 %v575
        %v608 = vunpack.c.l.bf16 %v576
        %v609 = vunpack.c.l.bf16 %v577
        %v610 = vunpack.c.l.bf16 %v578
        %v611 = vld [vmem:[%s407] sm:$0xff]
        %v612 = vld [vmem:[%s407 + $0x8] sm:$0xff]
        %v613 = vld [vmem:[%s407 + $0x10] sm:$0xff]
        %v614 = vld [vmem:[%s407 + $0x18] sm:$0xff]
        %v615 = vld [vmem:[%s407 + $0x20] sm:$0xff]
        %v616 = vld [vmem:[%s407 + $0x28] sm:$0xff]
        %v617 = vld [vmem:[%s407 + $0x30] sm:$0xff]
        %v618 = vld [vmem:[%s407 + $0x38] sm:$0xff]
        %v619 = vld [vmem:[%s407 + $0x40] sm:$0xff]
        %v620 = vld [vmem:[%s407 + $0x48] sm:$0xff]
        %v621 = vld [vmem:[%s407 + $0x50] sm:$0xff]
        %v622 = vld [vmem:[%s407 + $0x58] sm:$0xff]
        %v623 = vld [vmem:[%s407 + $0x60] sm:$0xff]
        %v624 = vld [vmem:[%s407 + $0x68] sm:$0xff]
        %v625 = vld [vmem:[%s407 + $0x70] sm:$0xff]
        %v626 = vld [vmem:[%s407 + $0x78] sm:$0xff]
        %v627 = vld [vmem:[%s407 + $0x80] sm:$0xff]
        %v628 = vld [vmem:[%s407 + $0x88] sm:$0xff]
        %v629 = vld [vmem:[%s407 + $0x90] sm:$0xff]
        %v630 = vld [vmem:[%s407 + $0x98] sm:$0xff]
        %v631 = vld [vmem:[%s407 + $0xa0] sm:$0xff]
        %v632 = vld [vmem:[%s407 + $0xa8] sm:$0xff]
        %v633 = vld [vmem:[%s407 + $0xb0] sm:$0xff]
        %v634 = vld [vmem:[%s407 + $0xb8] sm:$0xff]
        %v635 = vld [vmem:[%s407 + $0xc0] sm:$0xff]
        %v636 = vld [vmem:[%s407 + $0xc8] sm:$0xff]
        %v637 = vld [vmem:[%s407 + $0xd0] sm:$0xff]
        %v638 = vld [vmem:[%s407 + $0xd8] sm:$0xff]
        %v639 = vld [vmem:[%s407 + $0xe0] sm:$0xff]
        %v640 = vld [vmem:[%s407 + $0xe8] sm:$0xff]
        %v641 = vld [vmem:[%s407 + $0xf0] sm:$0xff]
        %v642 = vld [vmem:[%s407 + $0xf8] sm:$0xff]
        %v643 = vld [vmem:[%s412] sm:$0xff]
        %645 = vset.pattern.permute.xlu0 0
        %646 = vperm.xlu0 %645, %v611
        %v647 = vpop.permute.xlu0 %646
        %650 = vset.pattern.permute.xlu0 0
        %651 = vperm.xlu0 %650, %v612
        %v652 = vpop.permute.xlu0 %651
        %655 = vset.pattern.permute.xlu0 0
        %656 = vperm.xlu0 %655, %v613
        %v657 = vpop.permute.xlu0 %656
        %660 = vset.pattern.permute.xlu0 0
        %661 = vperm.xlu0 %660, %v614
        %v662 = vpop.permute.xlu0 %661
        %665 = vset.pattern.permute.xlu0 0
        %666 = vperm.xlu0 %665, %v615
        %v667 = vpop.permute.xlu0 %666
        %670 = vset.pattern.permute.xlu0 0
        %671 = vperm.xlu0 %670, %v616
        %v672 = vpop.permute.xlu0 %671
        %675 = vset.pattern.permute.xlu0 0
        %676 = vperm.xlu0 %675, %v617
        %v677 = vpop.permute.xlu0 %676
        %680 = vset.pattern.permute.xlu0 0
        %681 = vperm.xlu0 %680, %v618
        %v682 = vpop.permute.xlu0 %681
        %685 = vset.pattern.permute.xlu0 0
        %686 = vperm.xlu0 %685, %v619
        %v687 = vpop.permute.xlu0 %686
        %690 = vset.pattern.permute.xlu0 0
        %691 = vperm.xlu0 %690, %v620
        %v692 = vpop.permute.xlu0 %691
        %695 = vset.pattern.permute.xlu0 0
        %696 = vperm.xlu0 %695, %v621
        %v697 = vpop.permute.xlu0 %696
        %700 = vset.pattern.permute.xlu0 0
        %701 = vperm.xlu0 %700, %v622
        %v702 = vpop.permute.xlu0 %701
        %705 = vset.pattern.permute.xlu0 0
        %706 = vperm.xlu0 %705, %v623
        %v707 = vpop.permute.xlu0 %706
        %710 = vset.pattern.permute.xlu0 0
        %711 = vperm.xlu0 %710, %v624
        %v712 = vpop.permute.xlu0 %711
        %715 = vset.pattern.permute.xlu0 0
        %716 = vperm.xlu0 %715, %v625
        %v717 = vpop.permute.xlu0 %716
        %720 = vset.pattern.permute.xlu0 0
        %721 = vperm.xlu0 %720, %v626
        %v722 = vpop.permute.xlu0 %721
        %725 = vset.pattern.permute.xlu0 0
        %726 = vperm.xlu0 %725, %v627
        %v727 = vpop.permute.xlu0 %726
        %730 = vset.pattern.permute.xlu0 0
        %731 = vperm.xlu0 %730, %v628
        %v732 = vpop.permute.xlu0 %731
        %735 = vset.pattern.permute.xlu0 0
        %736 = vperm.xlu0 %735, %v629
        %v737 = vpop.permute.xlu0 %736
        %740 = vset.pattern.permute.xlu0 0
        %741 = vperm.xlu0 %740, %v630
        %v742 = vpop.permute.xlu0 %741
        %745 = vset.pattern.permute.xlu0 0
        %746 = vperm.xlu0 %745, %v631
        %v747 = vpop.permute.xlu0 %746
        %750 = vset.pattern.permute.xlu0 0
        %751 = vperm.xlu0 %750, %v632
        %v752 = vpop.permute.xlu0 %751
        %755 = vset.pattern.permute.xlu0 0
        %756 = vperm.xlu0 %755, %v633
        %v757 = vpop.permute.xlu0 %756
        %760 = vset.pattern.permute.xlu0 0
        %761 = vperm.xlu0 %760, %v634
        %v762 = vpop.permute.xlu0 %761
        %765 = vset.pattern.permute.xlu0 0
        %766 = vperm.xlu0 %765, %v635
        %v767 = vpop.permute.xlu0 %766
        %770 = vset.pattern.permute.xlu0 0
        %771 = vperm.xlu0 %770, %v636
        %v772 = vpop.permute.xlu0 %771
        %775 = vset.pattern.permute.xlu0 0
        %776 = vperm.xlu0 %775, %v637
        %v777 = vpop.permute.xlu0 %776
        %780 = vset.pattern.permute.xlu0 0
        %781 = vperm.xlu0 %780, %v638
        %v782 = vpop.permute.xlu0 %781
        %785 = vset.pattern.permute.xlu0 0
        %786 = vperm.xlu0 %785, %v639
        %v787 = vpop.permute.xlu0 %786
        %790 = vset.pattern.permute.xlu0 0
        %791 = vperm.xlu0 %790, %v640
        %v792 = vpop.permute.xlu0 %791
        %795 = vset.pattern.permute.xlu0 0
        %796 = vperm.xlu0 %795, %v641
        %v797 = vpop.permute.xlu0 %796
        %800 = vset.pattern.permute.xlu0 0
        %801 = vperm.xlu0 %800, %v642
        %v802 = vpop.permute.xlu0 %801
        %v804 = vlaneseq
        %v805 = vshrl.u32 %v804, 7
        %v806 = vsub.s32 0, %v805
        %v807 = vrot.slane %v643, %v806
        %v808 = vmul.f32 %v647, %v807
        %v809 = vmul.f32 %v652, %v807
        %v810 = vmul.f32 %v657, %v807
        %v811 = vmul.f32 %v662, %v807
        %v812 = vmul.f32 %v667, %v807
        %v813 = vmul.f32 %v672, %v807
        %v814 = vmul.f32 %v677, %v807
        %v815 = vmul.f32 %v682, %v807
        %v816 = vmul.f32 %v687, %v807
        %v817 = vmul.f32 %v692, %v807
        %v818 = vmul.f32 %v697, %v807
        %v819 = vmul.f32 %v702, %v807
        %v820 = vmul.f32 %v707, %v807
        %v821 = vmul.f32 %v712, %v807
        %v822 = vmul.f32 %v717, %v807
        %v823 = vmul.f32 %v722, %v807
        %v824 = vmul.f32 %v727, %v807
        %v825 = vmul.f32 %v732, %v807
        %v826 = vmul.f32 %v737, %v807
        %v827 = vmul.f32 %v742, %v807
        %v828 = vmul.f32 %v747, %v807
        %v829 = vmul.f32 %v752, %v807
        %v830 = vmul.f32 %v757, %v807
        %v831 = vmul.f32 %v762, %v807
        %v832 = vmul.f32 %v767, %v807
        %v833 = vmul.f32 %v772, %v807
        %v834 = vmul.f32 %v777, %v807
        %v835 = vmul.f32 %v782, %v807
        %v836 = vmul.f32 %v787, %v807
        %v837 = vmul.f32 %v792, %v807
        %v838 = vmul.f32 %v797, %v807
        %v839 = vmul.f32 %v802, %v807
        %v840 = vadd.f32 %v451, %v808
        %v841 = vadd.f32 %v452, %v809
        %v842 = vadd.f32 %v453, %v810
        %v843 = vadd.f32 %v454, %v811
        %v844 = vadd.f32 %v455, %v812
        %v845 = vadd.f32 %v456, %v813
        %v846 = vadd.f32 %v457, %v814
        %v847 = vadd.f32 %v458, %v815
        %v848 = vadd.f32 %v459, %v816
        %v849 = vadd.f32 %v460, %v817
        %v850 = vadd.f32 %v461, %v818
        %v851 = vadd.f32 %v462, %v819
        %v852 = vadd.f32 %v463, %v820
        %v853 = vadd.f32 %v464, %v821
        %v854 = vadd.f32 %v465, %v822
        %v855 = vadd.f32 %v466, %v823
        %v856 = vadd.f32 %v467, %v824
        %v857 = vadd.f32 %v468, %v825
        %v858 = vadd.f32 %v469, %v826
        %v859 = vadd.f32 %v470, %v827
        %v860 = vadd.f32 %v471, %v828
        %v861 = vadd.f32 %v472, %v829
        %v862 = vadd.f32 %v473, %v830
        %v863 = vadd.f32 %v474, %v831
        %v864 = vadd.f32 %v475, %v832
        %v865 = vadd.f32 %v476, %v833
        %v866 = vadd.f32 %v477, %v834
        %v867 = vadd.f32 %v478, %v835
        %v868 = vadd.f32 %v479, %v836
        %v869 = vadd.f32 %v480, %v837
        %v870 = vadd.f32 %v481, %v838
        %v871 = vadd.f32 %v482, %v839
        %872 = vset.pattern.permute.xlu0 1
        %873 = vperm.xlu0 %872, %v611
        %v874 = vpop.permute.xlu0 %873
        %876 = vset.pattern.permute.xlu0 1
        %877 = vperm.xlu0 %876, %v612
        %v878 = vpop.permute.xlu0 %877
        %880 = vset.pattern.permute.xlu0 1
        %881 = vperm.xlu0 %880, %v613
        %v882 = vpop.permute.xlu0 %881
        %884 = vset.pattern.permute.xlu0 1
        %885 = vperm.xlu0 %884, %v614
        %v886 = vpop.permute.xlu0 %885
        %888 = vset.pattern.permute.xlu0 1
        %889 = vperm.xlu0 %888, %v615
        %v890 = vpop.permute.xlu0 %889
        %892 = vset.pattern.permute.xlu0 1
        %893 = vperm.xlu0 %892, %v616
        %v894 = vpop.permute.xlu0 %893
        %896 = vset.pattern.permute.xlu0 1
        %897 = vperm.xlu0 %896, %v617
        %v898 = vpop.permute.xlu0 %897
        %900 = vset.pattern.permute.xlu0 1
        %901 = vperm.xlu0 %900, %v618
        %v902 = vpop.permute.xlu0 %901
        %904 = vset.pattern.permute.xlu0 1
        %905 = vperm.xlu0 %904, %v619
        %v906 = vpop.permute.xlu0 %905
        %908 = vset.pattern.permute.xlu0 1
        %909 = vperm.xlu0 %908, %v620
        %v910 = vpop.permute.xlu0 %909
        %912 = vset.pattern.permute.xlu0 1
        %913 = vperm.xlu0 %912, %v621
        %v914 = vpop.permute.xlu0 %913
        %916 = vset.pattern.permute.xlu0 1
        %917 = vperm.xlu0 %916, %v622
        %v918 = vpop.permute.xlu0 %917
        %920 = vset.pattern.permute.xlu0 1
        %921 = vperm.xlu0 %920, %v623
        %v922 = vpop.permute.xlu0 %921
        %924 = vset.pattern.permute.xlu0 1
        %925 = vperm.xlu0 %924, %v624
        %v926 = vpop.permute.xlu0 %925
        %928 = vset.pattern.permute.xlu0 1
        %929 = vperm.xlu0 %928, %v625
        %v930 = vpop.permute.xlu0 %929
        %932 = vset.pattern.permute.xlu0 1
        %933 = vperm.xlu0 %932, %v626
        %v934 = vpop.permute.xlu0 %933
        %936 = vset.pattern.permute.xlu0 1
        %937 = vperm.xlu0 %936, %v627
        %v938 = vpop.permute.xlu0 %937
        %940 = vset.pattern.permute.xlu0 1
        %941 = vperm.xlu0 %940, %v628
        %v942 = vpop.permute.xlu0 %941
        %944 = vset.pattern.permute.xlu0 1
        %945 = vperm.xlu0 %944, %v629
        %v946 = vpop.permute.xlu0 %945
        %948 = vset.pattern.permute.xlu0 1
        %949 = vperm.xlu0 %948, %v630
        %v950 = vpop.permute.xlu0 %949
        %952 = vset.pattern.permute.xlu0 1
        %953 = vperm.xlu0 %952, %v631
        %v954 = vpop.permute.xlu0 %953
        %956 = vset.pattern.permute.xlu0 1
        %957 = vperm.xlu0 %956, %v632
        %v958 = vpop.permute.xlu0 %957
        %960 = vset.pattern.permute.xlu0 1
        %961 = vperm.xlu0 %960, %v633
        %v962 = vpop.permute.xlu0 %961
        %964 = vset.pattern.permute.xlu0 1
        %965 = vperm.xlu0 %964, %v634
        %v966 = vpop.permute.xlu0 %965
        %968 = vset.pattern.permute.xlu0 1
        %969 = vperm.xlu0 %968, %v635
        %v970 = vpop.permute.xlu0 %969
        %972 = vset.pattern.permute.xlu0 1
        %973 = vperm.xlu0 %972, %v636
        %v974 = vpop.permute.xlu0 %973
        %976 = vset.pattern.permute.xlu0 1
        %977 = vperm.xlu0 %976, %v637
        %v978 = vpop.permute.xlu0 %977
        %980 = vset.pattern.permute.xlu0 1
        %981 = vperm.xlu0 %980, %v638
        %v982 = vpop.permute.xlu0 %981
        %984 = vset.pattern.permute.xlu0 1
        %985 = vperm.xlu0 %984, %v639
        %v986 = vpop.permute.xlu0 %985
        %988 = vset.pattern.permute.xlu0 1
        %989 = vperm.xlu0 %988, %v640
        %v990 = vpop.permute.xlu0 %989
        %992 = vset.pattern.permute.xlu0 1
        %993 = vperm.xlu0 %992, %v641
        %v994 = vpop.permute.xlu0 %993
        %996 = vset.pattern.permute.xlu0 1
        %997 = vperm.xlu0 %996, %v642
        %v998 = vpop.permute.xlu0 %997
        %v1000 = vlaneseq
        %v1001 = vshrl.u32 %v1000, 7
        %v1002 = vsub.s32 1, %v1001
        %v1003 = vrot.slane %v643, %v1002
        %v1004 = vmul.f32 %v874, %v1003
        %v1005 = vmul.f32 %v878, %v1003
        %v1006 = vmul.f32 %v882, %v1003
        %v1007 = vmul.f32 %v886, %v1003
        %v1008 = vmul.f32 %v890, %v1003
        %v1009 = vmul.f32 %v894, %v1003
        %v1010 = vmul.f32 %v898, %v1003
        %v1011 = vmul.f32 %v902, %v1003
        %v1012 = vmul.f32 %v906, %v1003
        %v1013 = vmul.f32 %v910, %v1003
        %v1014 = vmul.f32 %v914, %v1003
        %v1015 = vmul.f32 %v918, %v1003
        %v1016 = vmul.f32 %v922, %v1003
        %v1017 = vmul.f32 %v926, %v1003
        %v1018 = vmul.f32 %v930, %v1003
        %v1019 = vmul.f32 %v934, %v1003
        %v1020 = vmul.f32 %v938, %v1003
        %v1021 = vmul.f32 %v942, %v1003
        %v1022 = vmul.f32 %v946, %v1003
        %v1023 = vmul.f32 %v950, %v1003
        %v1024 = vmul.f32 %v954, %v1003
        %v1025 = vmul.f32 %v958, %v1003
        %v1026 = vmul.f32 %v962, %v1003
        %v1027 = vmul.f32 %v966, %v1003
        %v1028 = vmul.f32 %v970, %v1003
        %v1029 = vmul.f32 %v974, %v1003
        %v1030 = vmul.f32 %v978, %v1003
        %v1031 = vmul.f32 %v982, %v1003
        %v1032 = vmul.f32 %v986, %v1003
        %v1033 = vmul.f32 %v990, %v1003
        %v1034 = vmul.f32 %v994, %v1003
        %v1035 = vmul.f32 %v998, %v1003
        %v1036 = vadd.f32 %v515, %v1004
        %v1037 = vadd.f32 %v516, %v1005
        %v1038 = vadd.f32 %v517, %v1006
        %v1039 = vadd.f32 %v518, %v1007
        %v1040 = vadd.f32 %v519, %v1008
        %v1041 = vadd.f32 %v520, %v1009
        %v1042 = vadd.f32 %v521, %v1010
        %v1043 = vadd.f32 %v522, %v1011
        %v1044 = vadd.f32 %v523, %v1012
        %v1045 = vadd.f32 %v524, %v1013
        %v1046 = vadd.f32 %v525, %v1014
        %v1047 = vadd.f32 %v526, %v1015
        %v1048 = vadd.f32 %v527, %v1016
        %v1049 = vadd.f32 %v528, %v1017
        %v1050 = vadd.f32 %v529, %v1018
        %v1051 = vadd.f32 %v530, %v1019
        %v1052 = vadd.f32 %v531, %v1020
        %v1053 = vadd.f32 %v532, %v1021
        %v1054 = vadd.f32 %v533, %v1022
        %v1055 = vadd.f32 %v534, %v1023
        %v1056 = vadd.f32 %v535, %v1024
        %v1057 = vadd.f32 %v536, %v1025
        %v1058 = vadd.f32 %v537, %v1026
        %v1059 = vadd.f32 %v538, %v1027
        %v1060 = vadd.f32 %v539, %v1028
        %v1061 = vadd.f32 %v540, %v1029
        %v1062 = vadd.f32 %v541, %v1030
        %v1063 = vadd.f32 %v542, %v1031
        %v1064 = vadd.f32 %v543, %v1032
        %v1065 = vadd.f32 %v544, %v1033
        %v1066 = vadd.f32 %v545, %v1034
        %v1067 = vadd.f32 %v546, %v1035
        %v1068 = vmul.f32 %v1036, 1.442695
        %v1069 = vpow.pop %v1068
        %v1070 = vmul.f32 %v1037, 1.442695
        %v1071 = vpow.pop %v1070
        %v1072 = vmul.f32 %v1038, 1.442695
        %v1073 = vpow.pop %v1072
        %v1074 = vmul.f32 %v1039, 1.442695
        %v1075 = vpow.pop %v1074
        %v1076 = vmul.f32 %v1040, 1.442695
        %v1077 = vpow.pop %v1076
        %v1078 = vmul.f32 %v1041, 1.442695
        %v1079 = vpow.pop %v1078
        %v1080 = vmul.f32 %v1042, 1.442695
        %v1081 = vpow.pop %v1080
        %v1082 = vmul.f32 %v1043, 1.442695
        %v1083 = vpow.pop %v1082
        %v1084 = vmul.f32 %v1044, 1.442695
        %v1085 = vpow.pop %v1084
        %v1086 = vmul.f32 %v1045, 1.442695
        %v1087 = vpow.pop %v1086
        %v1088 = vmul.f32 %v1046, 1.442695
        %v1089 = vpow.pop %v1088
        %v1090 = vmul.f32 %v1047, 1.442695
        %v1091 = vpow.pop %v1090
        %v1092 = vmul.f32 %v1048, 1.442695
        %v1093 = vpow.pop %v1092
        %v1094 = vmul.f32 %v1049, 1.442695
        %v1095 = vpow.pop %v1094
        %v1096 = vmul.f32 %v1050, 1.442695
        %v1097 = vpow.pop %v1096
        %v1098 = vmul.f32 %v1051, 1.442695
        %v1099 = vpow.pop %v1098
        %v1100 = vmul.f32 %v1052, 1.442695
        %v1101 = vpow.pop %v1100
        %v1102 = vmul.f32 %v1053, 1.442695
        %v1103 = vpow.pop %v1102
        %v1104 = vmul.f32 %v1054, 1.442695
        %v1105 = vpow.pop %v1104
        %v1106 = vmul.f32 %v1055, 1.442695
        %v1107 = vpow.pop %v1106
        %v1108 = vmul.f32 %v1056, 1.442695
        %v1109 = vpow.pop %v1108
        %v1110 = vmul.f32 %v1057, 1.442695
        %v1111 = vpow.pop %v1110
        %v1112 = vmul.f32 %v1058, 1.442695
        %v1113 = vpow.pop %v1112
        %v1114 = vmul.f32 %v1059, 1.442695
        %v1115 = vpow.pop %v1114
        %v1116 = vmul.f32 %v1060, 1.442695
        %v1117 = vpow.pop %v1116
        %v1118 = vmul.f32 %v1061, 1.442695
        %v1119 = vpow.pop %v1118
        %v1120 = vmul.f32 %v1062, 1.442695
        %v1121 = vpow.pop %v1120
        %v1122 = vmul.f32 %v1063, 1.442695
        %v1123 = vpow.pop %v1122
        %v1124 = vmul.f32 %v1064, 1.442695
        %v1125 = vpow.pop %v1124
        %v1126 = vmul.f32 %v1065, 1.442695
        %v1127 = vpow.pop %v1126
        %v1128 = vmul.f32 %v1066, 1.442695
        %v1129 = vpow.pop %v1128
        %v1130 = vmul.f32 %v1067, 1.442695
        %v1131 = vpow.pop %v1130
        %v1132 = vmul.f32 %v1069, %v579
        %v1133 = vmul.f32 %v1071, %v580
        %v1134 = vmul.f32 %v1073, %v581
        %v1135 = vmul.f32 %v1075, %v582
        %v1136 = vmul.f32 %v1077, %v583
        %v1137 = vmul.f32 %v1079, %v584
        %v1138 = vmul.f32 %v1081, %v585
        %v1139 = vmul.f32 %v1083, %v586
        %v1140 = vmul.f32 %v1085, %v587
        %v1141 = vmul.f32 %v1087, %v588
        %v1142 = vmul.f32 %v1089, %v589
        %v1143 = vmul.f32 %v1091, %v590
        %v1144 = vmul.f32 %v1093, %v591
        %v1145 = vmul.f32 %v1095, %v592
        %v1146 = vmul.f32 %v1097, %v593
        %v1147 = vmul.f32 %v1099, %v594
        %v1148 = vmul.f32 %v1101, %v595
        %v1149 = vmul.f32 %v1103, %v596
        %v1150 = vmul.f32 %v1105, %v597
        %v1151 = vmul.f32 %v1107, %v598
        %v1152 = vmul.f32 %v1109, %v599
        %v1153 = vmul.f32 %v1111, %v600
        %v1154 = vmul.f32 %v1113, %v601
        %v1155 = vmul.f32 %v1115, %v602
        %v1156 = vmul.f32 %v1117, %v603
        %v1157 = vmul.f32 %v1119, %v604
        %v1158 = vmul.f32 %v1121, %v605
        %v1159 = vmul.f32 %v1123, %v606
        %v1160 = vmul.f32 %v1125, %v607
        %v1161 = vmul.f32 %v1127, %v608
        %v1162 = vmul.f32 %v1129, %v609
        %v1163 = vmul.f32 %v1131, %v610
        %v1164 = vadd.f32 %v840, %v1132
        %v1165 = vadd.f32 %v841, %v1133
        %v1166 = vadd.f32 %v842, %v1134
        %v1167 = vadd.f32 %v843, %v1135
        %v1168 = vadd.f32 %v844, %v1136
        %v1169 = vadd.f32 %v845, %v1137
        %v1170 = vadd.f32 %v846, %v1138
        %v1171 = vadd.f32 %v847, %v1139
        %v1172 = vadd.f32 %v848, %v1140
        %v1173 = vadd.f32 %v849, %v1141
        %v1174 = vadd.f32 %v850, %v1142
        %v1175 = vadd.f32 %v851, %v1143
        %v1176 = vadd.f32 %v852, %v1144
        %v1177 = vadd.f32 %v853, %v1145
        %v1178 = vadd.f32 %v854, %v1146
        %v1179 = vadd.f32 %v855, %v1147
        %v1180 = vadd.f32 %v856, %v1148
        %v1181 = vadd.f32 %v857, %v1149
        %v1182 = vadd.f32 %v858, %v1150
        %v1183 = vadd.f32 %v859, %v1151
        %v1184 = vadd.f32 %v860, %v1152
        %v1185 = vadd.f32 %v861, %v1153
        %v1186 = vadd.f32 %v862, %v1154
        %v1187 = vadd.f32 %v863, %v1155
        %v1188 = vadd.f32 %v864, %v1156
        %v1189 = vadd.f32 %v865, %v1157
        %v1190 = vadd.f32 %v866, %v1158
        %v1191 = vadd.f32 %v867, %v1159
        %v1192 = vadd.f32 %v868, %v1160
        %v1193 = vadd.f32 %v869, %v1161
        %v1194 = vadd.f32 %v870, %v1162
        %v1195 = vadd.f32 %v871, %v1163
        %s1196 = smul.u32 %s31, 256
        %s1197 = sshra.s32 %s1196, 7
        %s1198 = sand.u32 %s1196, 127
        %s1199 = smul.addr %s1197, 8
        %s1200 = scalar_lea.vmem %s0, %s1199
        %v1201 = vld [vmem:[%s1200] sm:$0xff]
        %v1202 = vld [vmem:[%s1200 + $0x8] sm:$0xff]
        %v1203 = vld [vmem:[#allocation2] sm:$0xff]
        %v1204 = vpack.c.bf16 %v1201, %v1201
        %v1205 = vpack.c.bf16 %v1202, %v1202
        %v1206 = vpack.c.bf16 %v1165, %v1164
        %v1207 = vpack.c.bf16 %v1167, %v1166
        %v1208 = vpack.c.bf16 %v1169, %v1168
        %v1209 = vpack.c.bf16 %v1171, %v1170
        %v1210 = vpack.c.bf16 %v1173, %v1172
        %v1211 = vpack.c.bf16 %v1175, %v1174
        %v1212 = vpack.c.bf16 %v1177, %v1176
        %v1213 = vpack.c.bf16 %v1179, %v1178
        %v1214 = vpack.c.bf16 %v1181, %v1180
        %v1215 = vpack.c.bf16 %v1183, %v1182
        %v1216 = vpack.c.bf16 %v1185, %v1184
        %v1217 = vpack.c.bf16 %v1187, %v1186
        %v1218 = vpack.c.bf16 %v1189, %v1188
        %v1219 = vpack.c.bf16 %v1191, %v1190
        %v1220 = vpack.c.bf16 %v1193, %v1192
        %v1221 = vpack.c.bf16 %v1195, %v1194
        %1222 = vmatprep.subr.bf16.mxu0 0
        %1223 = vmatpush1.bf16.msra.mxu0 %v1206
        %1224 = vmatprep.subr.bf16.mxu0 0
        %1225 = vmatpush1.bf16.msra.mxu0 %v1207
        %1226 = vmatprep.subr.bf16.mxu0 0
        %1227 = vmatpush1.bf16.msra.mxu0 %v1208
        %1228 = vmatprep.subr.bf16.mxu0 0
        %1229 = vmatpush1.bf16.msra.mxu0 %v1209
        %1230 = vmatprep.subr.bf16.mxu0 0
        %1231 = vmatpush1.bf16.msra.mxu0 %v1210
        %1232 = vmatprep.subr.bf16.mxu0 0
        %1233 = vmatpush1.bf16.msra.mxu0 %v1211
        %1234 = vmatprep.subr.bf16.mxu0 0
        %1235 = vmatpush1.bf16.msra.mxu0 %v1212
        %1236 = vmatprep.subr.bf16.mxu0 0
        %1237 = vmatpush1.bf16.msra.mxu0 %v1213
        %1238 = vmatprep.subr.bf16.mxu0 0
        %1239 = vmatpush1.bf16.msra.mxu0 %v1214
        %1240 = vmatprep.subr.bf16.mxu0 0
        %1241 = vmatpush1.bf16.msra.mxu0 %v1215
        %1242 = vmatprep.subr.bf16.mxu0 0
        %1243 = vmatpush1.bf16.msra.mxu0 %v1216
        %1244 = vmatprep.subr.bf16.mxu0 0
        %1245 = vmatpush1.bf16.msra.mxu0 %v1217
        %1246 = vmatprep.subr.bf16.mxu0 0
        %1247 = vmatpush1.bf16.msra.mxu0 %v1218
        %1248 = vmatprep.subr.bf16.mxu0 0
        %1249 = vmatpush1.bf16.msra.mxu0 %v1219
        %1250 = vmatprep.subr.bf16.mxu0 0
        %1251 = vmatpush1.bf16.msra.mxu0 %v1220
        %1252 = vmatprep.subr.bf16.mxu0 0
        %1253 = vmatpush1.bf16.msra.mxu0 %v1221
        %1254 = vmatprep.mubr.bf16.mxu0 %v1205
        %1255 = vmatmul.mubr.bf16.gmra.mrb[0].mxu0 %v1204
        %v1256 = vpop.f32.mrb[0].mxu0
        %v1257 = vadd.f32 0.0, %v1256
        %v1258 = vpop.f32.mrb[0].mxu0
        %v1259 = vpop.f32.mrb[0].mxu0
        %v1260 = vpop.f32.mrb[0].mxu0
        %1261 = vdwg.mxu0
        %v1262 = vadd.f32 %v1203, %v1257
        %1263 = vst [vmem:[#allocation2] sm:$0xff] %v1262
        // Predicated region
        $region61: #{tpu_custom_call.1} parent=43 // pred_check
          %p1264 = pneg %p414
        $region62: #{tpu_custom_call.1} parent=43 // pred_check_branch
          %1266 = sbr.rel (%p1264) target = $region64
        $region63: #{tpu_custom_call.1} parent=43 // pred_region
          %v1267 = vmul.f32 %v643, 1.442695
          %v1268 = vpow.pop %v1267
          %v1270 = vrot.slane %v643, 1
          %v1272 = vmul.f32 %v1268, %v1270
          %v1274 = vrot.slane %v1272, 1
          %v1276 = vadd.f32 %v643, %v1274
          %v1277 = vld [vmem:[#allocation2] sm:$0xff]
          %v1278 = vlaneseq
          %v1279 = vshrl.u32 %v1278, 7
          %v1280 = vsub.s32 2, %v1279
          %v1281 = vrot.slane %v1276, %v1280
          %v1282 = vadd.f32 %v1277, %v1281
          %v1283 = vmax.f32 %v1282, 0.0
          %1284 = vst [vmem:[%s399] sm:$0xff] %v1283
        $region64: #{tpu_custom_call.1} parent=43 // pred_fallthru
          _
        %s1285 = sand.u32 %s203, 1
        %s1286 = scalar_lea.sflag [#allocation5], %s1285
        %s1287 = sand.u32 %s203, 1
        %s1288 = smul.addr %s1287, 8
        %s1289 = scalar_lea.vmem [#allocation9], %s1288
        // Predicated region
        $region65: #{tpu_custom_call.1} parent=43 // pred_check
          %p1290 = pneg %p213
        $region66: #{tpu_custom_call.1} parent=43 // pred_check_branch
          %1292 = sbr.rel (%p1290) target = $region68
        $region67: #{tpu_custom_call.1} parent=43 // pred_region
          %s1294 = ssub.s32 128, 128
          %1295 = vsyncadd %s1286, %s1294
          %s1296 = smul.addr %s30, 128
          %s1297 = scalar_lea.hbm %s6, %s1296
          %s1299 = sshll.u32 %s1289, 4
          %s1300 = int_to_ptr.vmem [resolvable:$true] %s1299
          %1302 = dma.vmem_to_hbm [thread:$0]  %s1300, 128, %s1297, %s1286
        $region68: #{tpu_custom_call.1} parent=43 // pred_fallthru
          _
      $region44: #{tpu_custom_call.1} parent=5 // pred_fallthru
        _
      %p1303 = scmp.le.s32.totalorder 2, %s21
      // Predicated region
      $region69: #{tpu_custom_call.1} parent=5 // pred_check
        %p1304 = pneg %p1303
      $region70: #{tpu_custom_call.1} parent=5 // pred_check_branch
        %1306 = sbr.rel (%p1304) target = $region72
      $region71: #{tpu_custom_call.1} parent=5 // pred_region
        %s1307 = ssub.s32 %s21, 2
        // Predicated region
        $region73: #{tpu_custom_call.1} parent=71 // pred_check
          %p1308 = pneg %p219
        $region74: #{tpu_custom_call.1} parent=71 // pred_check_branch
          %1310 = sbr.rel (%p1308) target = $region76
        $region75: #{tpu_custom_call.1} parent=71 // pred_region
          %s1311 = sand.u32 %s204, 1
          %s1312 = scalar_lea.sflag [#allocation5], %s1311
          %s1313 = sand.u32 %s204, 1
          %s1314 = smul.addr %s1313, 8
          %s1315 = scalar_lea.vmem [#allocation9], %s1314
          %1316 = dma.done %s1312, 128
        $region76: #{tpu_custom_call.1} parent=71 // pred_fallthru
          _
      $region72: #{tpu_custom_call.1} parent=5 // pred_fallthru
        _
    $region6: #{tpu_custom_call.1} parent=1 // loop_footer
      %s25 = sadd.s32 1, %s21
    $region7: #{tpu_custom_call.1} parent=1 // loop_footer_branch
      %20 = sbr.rel target = $region3
    $region8: #{tpu_custom_call.1} parent=1 // loop_exit
      _
    %1317 = vsyncpa [#allocation4], 1
    %s1318 = scalar_lea.sflag [#allocation4], 1
    %1319 = vsyncpa %s1318, 1
    %1320 = vsyncpa [#allocation7], 1
    %s1321 = scalar_lea.sflag [#allocation7], 1
    %1322 = vsyncpa %s1321, 1
    %1323 = vsyncpa [#allocation5], 1
    %s1324 = scalar_lea.sflag [#allocation5], 1
    %1325 = vsyncpa %s1324, 1

</llo_original>
